<compile_context>
chip_gen: v5e
topology: v5e:2x2
jax: 0.10.0
libtpu: 0.0.40
codegen_flags: <defaults>
</compile_context>

<pallas_src>
import functools

import numpy as np
import jax
import jax.numpy as jnp
from jax import lax
from jax.experimental import pallas as pl
from jax.experimental.pallas import tpu as pltpu


# ----------------------------- fused kernel --------------------------------
def _fused_encoder_kernel(x_ref, m_ref, w1_ref, w2_ref, p_ref, o_ref,
                          *, W, C, F, num_layers, eps=1e-5):
    """Both encoder layers fused; activations are (C, B*HW) channel-major."""
    N = x_ref.shape[1]
    x = x_ref[...].astype(jnp.float32)            # (C, N)

    # Precomputed, layer-invariant pooling masks / inverse counts (one load).
    m = m_ref[...]                                # (5, N)
    m_hm, m_hp = m[0:1, :], m[1:2, :]             # h-1 / h+1 neighbor valid
    m_wm, m_wp = m[2:3, :], m[3:4, :]             # w-1 / w+1 neighbor valid
    inv_cnt = m[4:5, :]                           # 1 / count_include_pad=False divisor

    def layer_norm(v, g, b):                      # LN over channels = axis 0
        mu = jnp.mean(v, axis=0, keepdims=True)
        ms = jnp.mean(v * v, axis=0, keepdims=True)
        var = ms - mu * mu                        # one pass: independent reductions
        return (v - mu) * lax.rsqrt(var + eps) * g + b

    for l in range(num_layers):                   # static unroll (2 layers)
        # ---- 3x3 avg pool (stride 1, pad 1, count_include_pad=False) via
        #      separable lane rotations (XLU) + precomputed boundary masks.
        rowsum = (x
                  + m_hm * pltpu.roll(x, shift=W, axis=1)        # from h-1
                  + m_hp * pltpu.roll(x, shift=N - W, axis=1))   # from h+1
        s = (rowsum
             + m_wm * pltpu.roll(rowsum, shift=1, axis=1)        # from w-1
             + m_wp * pltpu.roll(rowsum, shift=N - 1, axis=1))   # from w+1
        x = x + s * inv_cnt                       # residual with pooled features

        # ---- per-layer packed vectors: [b1(F) | b2(C) | g1 | be1 | g2 | be2]
        pv = p_ref[l]                             # (F + 5*C, 1)
        b1 = pv[0:F]
        b2 = pv[F:F + C]
        g1 = pv[F + C:F + 2 * C]
        be1 = pv[F + 2 * C:F + 3 * C]
        g2 = pv[F + 3 * C:F + 4 * C]
        be2 = pv[F + 4 * C:F + 5 * C]

        # ---- LayerNorm 1 ----
        xn = layer_norm(x, g1, be1)

        # ---- FFN on MXU, lane-dense (N-wide) results ----
        h = jnp.dot(w1_ref[l], xn, preferred_element_type=jnp.float32) + b1
        h = jnp.maximum(h, 0.0)
        y = jnp.dot(w2_ref[l], h, preferred_element_type=jnp.float32) + b2

        # ---- residual + LayerNorm 2 ----
        x = layer_norm(xn + y, g2, be2)

    o_ref[...] = x.astype(o_ref.dtype)


# ------------------------------- wrapper ------------------------------------
def win_encoder_transformer_forward(src_nchw, pos_embed, mask, params):
    # pos_embed / mask accepted to match the PyTorch signature; the pooling
    # encoder layers of this model do not use them in forward.
    del pos_embed, mask
    B, C, H, W = src_nchw.shape
    HW = H * W
    N = B * HW
    L, F, _ = params["w1"].shape

    # Channel-major with batch folded into the lane axis: (C, B*HW).
    # (tiny layout plumbing in XLA; kernel matmuls/stores stay full-lane-width)
    x = jnp.transpose(src_nchw.reshape(B, C, HW), (1, 0, 2)).reshape(C, N)

    # Pooling boundary masks / exact inverse counts: pure shape constants,
    # built with numpy at trace time (hoisted out of the kernel entirely).
    # NOTE: masks derive from the per-image index (gi % HW), so the lane rolls
    # can never mix batch elements.
    gi = np.arange(N)
    pi = gi % HW
    hi, wi = pi // W, pi % W
    m_hm = (hi >= 1).astype(np.float32)
    m_hp = (hi <= H - 2).astype(np.float32)
    m_wm = (wi >= 1).astype(np.float32)
    m_wp = (wi <= W - 2).astype(np.float32)
    inv_cnt = (1.0 / ((1.0 + m_hm + m_hp) * (1.0 + m_wm + m_wp))).astype(np.float32)
    masks = jnp.asarray(np.stack([m_hm, m_hp, m_wm, m_wp, inv_cnt], axis=0))

    grid_spec = pltpu.PrefetchScalarGridSpec(
        num_scalar_prefetch=0,
        grid=(1,),                                # single step: batch folded into lanes
        in_specs=[
            pl.BlockSpec((C, N), lambda i: (0, 0)),                # activations
            pl.BlockSpec((5, N), lambda i: (0, 0)),                # pool masks / inv counts
            pl.BlockSpec((L, F, C), lambda i: (0, 0, 0)),          # W1 (stacked layers)
            pl.BlockSpec((L, C, F), lambda i: (0, 0, 0)),          # W2
            pl.BlockSpec((L, F + 5 * C, 1), lambda i: (0, 0, 0)),  # packed bias/LN slab
        ],
        out_specs=pl.BlockSpec((C, N), lambda i: (0, 0)),
    )
    out = pl.pallas_call(
        functools.partial(_fused_encoder_kernel, W=W, C=C, F=F, num_layers=L),
        out_shape=jax.ShapeDtypeStruct((C, N), src_nchw.dtype),
        grid_spec=grid_spec,
        compiler_params=pltpu.CompilerParams(
            dimension_semantics=("arbitrary",)),
    )(x, masks, params["w1"], params["w2"], params["pslab"])
    return jnp.transpose(out.reshape(C, B, HW), (1, 0, 2)).reshape(B, C, H, W)


# --------------------------- parameter creation ------------------------------
def init_params(key, d_model=32, dim_feedforward=64, num_layers=2):
    """Deterministic synthetic params, stacked over layers."""
    C, F, L = d_model, dim_feedforward, num_layers
    w1s, w2s = [], []
    vecs = {k: [] for k in ("b1", "b2", "g1", "be1", "g2", "be2")}
    for _ in range(L):
        key, k1, k2, k3, k4, k5, k6, k7, k8 = jax.random.split(key, 9)
        a1 = (6.0 / (C + F)) ** 0.5
        w1s.append(jax.random.uniform(k1, (F, C), jnp.float32, -a1, a1))
        vecs["b1"].append(jax.random.uniform(k2, (F,), jnp.float32, -C ** -0.5, C ** -0.5))
        a2 = (6.0 / (F + C)) ** 0.5
        w2s.append(jax.random.uniform(k3, (C, F), jnp.float32, -a2, a2))
        vecs["b2"].append(jax.random.uniform(k4, (C,), jnp.float32, -F ** -0.5, F ** -0.5))
        vecs["g1"].append(1.0 + 0.1 * jax.random.normal(k5, (C,), jnp.float32))
        vecs["be1"].append(0.1 * jax.random.normal(k6, (C,), jnp.float32))
        vecs["g2"].append(1.0 + 0.1 * jax.random.normal(k7, (C,), jnp.float32))
        vecs["be2"].append(0.1 * jax.random.normal(k8, (C,), jnp.float32))
    st = lambda xs: jnp.stack(xs, axis=0)
    p = {k: st(v) for k, v in vecs.items()}      # each (L, F) or (L, C)
    # pack the six per-layer vectors into a single (L, F+5C, 1) slab -> one DMA
    pslab = jnp.concatenate(
        [p["b1"], p["b2"], p["g1"], p["be1"], p["g2"], p["be2"]], axis=1)[:, :, None]
    return dict(w1=st(w1s), w2=st(w2s), pslab=pslab, **p)


# ----------------------- pure-JAX reference (NHWC) ---------------------------
def _ref_avgpool3(x):  # NHWC, 3x3, stride 1, pad 1, count_include_pad=False
    B, H, W, C = x.shape
    xp = jnp.pad(x, ((0, 0), (1, 1), (1, 1), (0, 0)))
    op = jnp.pad(jnp.ones_like(x), ((0, 0), (1, 1), (1, 1), (0, 0)))
    s = jnp.zeros_like(x)
    cnt = jnp.zeros_like(x)
    for i in range(3):
        for j in range(3):
            s = s + xp[:, i:i + H, j:j + W, :]
            cnt = cnt + op[:, i:i + H, j:j + W, :]
    return s / cnt


def _ref_forward(src_nchw, params):
    x = jnp.transpose(src_nchw, (0, 2, 3, 1))        # NHWC
    L = params["w1"].shape[0]

    def ln(v, g, b):
        mu = v.mean(-1, keepdims=True)
        var = ((v - mu) ** 2).mean(-1, keepdims=True)
        return (v - mu) / jnp.sqrt(var + 1e-5) * g + b

    for l in range(L):
        W1 = params["w1"][l]             # (F, C)
        b1 = params["b1"][l]             # (F,)
        W2 = params["w2"][l]             # (C, F)
        b2 = params["b2"][l]             # (C,)
        g1, be1 = params["g1"][l], params["be1"][l]
        g2, be2 = params["g2"][l], params["be2"][l]

        x = x + _ref_avgpool3(x)
        xn = ln(x, g1, be1)
        y = jnp.maximum(xn @ W1.T + b1, 0.0) @ W2.T + b2
        x = ln(xn + y, g2, be2)
    return jnp.transpose(x, (0, 3, 1, 2))            # back to NCHW


# --------------------------------- main --------------------------------------
if __name__ == "__main__":
    key = jax.random.PRNGKey(0)
    B, d_model, H, W = 2, 32, 16, 16
    dim_feedforward = 64

    kp, kx = jax.random.split(key)
    params = init_params(kp, d_model, dim_feedforward, num_layers=2)
    src = jax.random.normal(kx, (B, d_model, H, W), jnp.float32)   # NCHW like PyTorch
    pos_embed = jnp.zeros_like(src)                                # unused by forward
    mask = jnp.zeros((B, H, W), jnp.bool_)                         # unused by forward

    fwd = jax.jit(win_encoder_transformer_forward)
    out = fwd(src, pos_embed, mask, params)
    out = jax.block_until_ready(out)

    ref = _ref_forward(src, params)

    assert out.shape == src.shape and out.dtype == src.dtype
    if not jnp.allclose(out, ref, atol=1e-4, rtol=1e-4):
        raise AssertionError("Pallas kernel output mismatches JAX reference")
    print("KERNEL_OK")
</pallas_src>

<mosaic_0001>
module attributes {stable_mosaic.version = 11 : i64} {
  func.func @_fused_encoder_kernel(%arg0: i32, %arg1: memref<32x512xf32, #tpu.memory_space<vmem>>, %arg2: memref<5x512xf32, #tpu.memory_space<vmem>>, %arg3: memref<2x64x32xf32, #tpu.memory_space<vmem>>, %arg4: memref<2x32x64xf32, #tpu.memory_space<vmem>>, %arg5: memref<2x224x1xf32, #tpu.memory_space<vmem>>, %arg6: memref<32x512xf32, #tpu.memory_space<vmem>>) attributes {dimension_semantics = [#tpu.dimension_semantics<arbitrary>], iteration_bounds = array<i64: 1>, scalar_prefetch = 0 : i64, scratch_operands = 0 : i64, tpu.core_type = #tpu.core_type<tc>, window_params = [{pipeline_mode = #tpu.pipeline_mode<synchronous>, transform_indices = @transform_0, window_bounds = array<i64: 32, 512>}, {pipeline_mode = #tpu.pipeline_mode<synchronous>, transform_indices = @transform_1, window_bounds = array<i64: 5, 512>}, {pipeline_mode = #tpu.pipeline_mode<synchronous>, transform_indices = @transform_2, window_bounds = array<i64: 2, 64, 32>}, {pipeline_mode = #tpu.pipeline_mode<synchronous>, transform_indices = @transform_3, window_bounds = array<i64: 2, 32, 64>}, {pipeline_mode = #tpu.pipeline_mode<synchronous>, transform_indices = @transform_4, window_bounds = array<i64: 2, 224, 1>}, {pipeline_mode = #tpu.pipeline_mode<synchronous>, transform_indices = @transform_5, window_bounds = array<i64: 32, 512>}]} {
    %c0 = arith.constant 0 : index
    %c0_0 = arith.constant 0 : index
    %0 = vector.load %arg1[%c0, %c0_0] : memref<32x512xf32, #tpu.memory_space<vmem>>, vector<32x512xf32>
    %c0_1 = arith.constant 0 : index
    %c0_2 = arith.constant 0 : index
    %1 = vector.load %arg2[%c0_1, %c0_2] : memref<5x512xf32, #tpu.memory_space<vmem>>, vector<5x512xf32>
    %2 = vector.extract_strided_slice %1 {offsets = [0, 0], sizes = [1, 512], strides = [1, 1]} : vector<5x512xf32> to vector<1x512xf32>
    %3 = vector.extract_strided_slice %1 {offsets = [1, 0], sizes = [1, 512], strides = [1, 1]} : vector<5x512xf32> to vector<1x512xf32>
    %4 = vector.extract_strided_slice %1 {offsets = [2, 0], sizes = [1, 512], strides = [1, 1]} : vector<5x512xf32> to vector<1x512xf32>
    %5 = vector.extract_strided_slice %1 {offsets = [3, 0], sizes = [1, 512], strides = [1, 1]} : vector<5x512xf32> to vector<1x512xf32>
    %6 = vector.extract_strided_slice %1 {offsets = [4, 0], sizes = [1, 512], strides = [1, 1]} : vector<5x512xf32> to vector<1x512xf32>
    %c16_i32 = arith.constant 16 : i32
    %7 = tpu.dynamic_rotate %0 by %c16_i32 dim 1 : vector<32x512xf32>, i32 -> vector<32x512xf32>
    %8 = vector.broadcast %2 : vector<1x512xf32> to vector<32x512xf32>
    %9 = arith.mulf %8, %7 : vector<32x512xf32>
    %10 = arith.addf %0, %9 : vector<32x512xf32>
    %c496_i32 = arith.constant 496 : i32
    %11 = tpu.dynamic_rotate %0 by %c496_i32 dim 1 : vector<32x512xf32>, i32 -> vector<32x512xf32>
    %12 = vector.broadcast %3 : vector<1x512xf32> to vector<32x512xf32>
    %13 = arith.mulf %12, %11 : vector<32x512xf32>
    %14 = arith.addf %10, %13 : vector<32x512xf32>
    %c1_i32 = arith.constant 1 : i32
    %15 = tpu.dynamic_rotate %14 by %c1_i32 dim 1 : vector<32x512xf32>, i32 -> vector<32x512xf32>
    %16 = vector.broadcast %4 : vector<1x512xf32> to vector<32x512xf32>
    %17 = arith.mulf %16, %15 : vector<32x512xf32>
    %18 = arith.addf %14, %17 : vector<32x512xf32>
    %c511_i32 = arith.constant 511 : i32
    %19 = tpu.dynamic_rotate %14 by %c511_i32 dim 1 : vector<32x512xf32>, i32 -> vector<32x512xf32>
    %20 = vector.broadcast %5 : vector<1x512xf32> to vector<32x512xf32>
    %21 = arith.mulf %20, %19 : vector<32x512xf32>
    %22 = arith.addf %18, %21 : vector<32x512xf32>
    %23 = vector.broadcast %6 : vector<1x512xf32> to vector<32x512xf32>
    %24 = arith.mulf %22, %23 : vector<32x512xf32>
    %25 = arith.addf %0, %24 : vector<32x512xf32>
    %c0_3 = arith.constant 0 : index
    %c0_4 = arith.constant 0 : index
    %c0_5 = arith.constant 0 : index
    %26 = vector.load %arg5[%c0_3, %c0_4, %c0_5] : memref<2x224x1xf32, #tpu.memory_space<vmem>>, vector<1x224x1xf32>
    %27 = vector.shape_cast %26 : vector<1x224x1xf32> to vector<224x1xf32>
    %28 = vector.extract_strided_slice %27 {offsets = [0, 0], sizes = [64, 1], strides = [1, 1]} : vector<224x1xf32> to vector<64x1xf32>
    %29 = vector.extract_strided_slice %27 {offsets = [64, 0], sizes = [32, 1], strides = [1, 1]} : vector<224x1xf32> to vector<32x1xf32>
    %30 = vector.extract_strided_slice %27 {offsets = [96, 0], sizes = [32, 1], strides = [1, 1]} : vector<224x1xf32> to vector<32x1xf32>
    %31 = vector.extract_strided_slice %27 {offsets = [128, 0], sizes = [32, 1], strides = [1, 1]} : vector<224x1xf32> to vector<32x1xf32>
    %32 = vector.extract_strided_slice %27 {offsets = [160, 0], sizes = [32, 1], strides = [1, 1]} : vector<224x1xf32> to vector<32x1xf32>
    %33 = vector.extract_strided_slice %27 {offsets = [192, 0], sizes = [32, 1], strides = [1, 1]} : vector<224x1xf32> to vector<32x1xf32>
    %cst = arith.constant dense<0.000000e+00> : vector<512xf32>
    %34 = vector.multi_reduction <add>, %25, %cst [0] : vector<32x512xf32> to vector<512xf32>
    %35 = vector.shape_cast %34 : vector<512xf32> to vector<1x512xf32>
    %cst_6 = arith.constant 3.200000e+01 : f32
    %36 = vector.broadcast %cst_6 : f32 to vector<1x512xf32>
    %37 = arith.divf %35, %36 : vector<1x512xf32>
    %38 = arith.mulf %25, %25 : vector<32x512xf32>
    %cst_7 = arith.constant dense<0.000000e+00> : vector<512xf32>
    %39 = vector.multi_reduction <add>, %38, %cst_7 [0] : vector<32x512xf32> to vector<512xf32>
    %40 = vector.shape_cast %39 : vector<512xf32> to vector<1x512xf32>
    %cst_8 = arith.constant 3.200000e+01 : f32
    %41 = vector.broadcast %cst_8 : f32 to vector<1x512xf32>
    %42 = arith.divf %40, %41 : vector<1x512xf32>
    %43 = arith.mulf %37, %37 : vector<1x512xf32>
    %44 = arith.subf %42, %43 : vector<1x512xf32>
    %45 = vector.broadcast %37 : vector<1x512xf32> to vector<32x512xf32>
    %46 = arith.subf %25, %45 : vector<32x512xf32>
    %cst_9 = arith.constant 9.99999974E-6 : f32
    %47 = vector.broadcast %cst_9 : f32 to vector<1x512xf32>
    %48 = arith.addf %44, %47 : vector<1x512xf32>
    %49 = math.rsqrt %48 : vector<1x512xf32>
    %50 = vector.broadcast %49 : vector<1x512xf32> to vector<32x512xf32>
    %51 = arith.mulf %46, %50 : vector<32x512xf32>
    %52 = vector.broadcast %30 : vector<32x1xf32> to vector<32x512xf32>
    %53 = arith.mulf %51, %52 : vector<32x512xf32>
    %54 = vector.broadcast %31 : vector<32x1xf32> to vector<32x512xf32>
    %55 = arith.addf %53, %54 : vector<32x512xf32>
    %c0_10 = arith.constant 0 : index
    %c0_11 = arith.constant 0 : index
    %c0_12 = arith.constant 0 : index
    %56 = vector.load %arg3[%c0_10, %c0_11, %c0_12] : memref<2x64x32xf32, #tpu.memory_space<vmem>>, vector<1x64x32xf32>
    %57 = vector.shape_cast %56 : vector<1x64x32xf32> to vector<64x32xf32>
    %cst_13 = arith.constant dense<0.000000e+00> : vector<64x512xf32>
    %58 = tpu.matmul %57, %55, %cst_13 {dimension_numbers = #tpu.dot_dimension_numbers<[1], [0], [0], [1], [0, 0, 1, 1], [], []>} : vector<64x32xf32>, vector<32x512xf32>, vector<64x512xf32> -> vector<64x512xf32>
    %59 = vector.broadcast %28 : vector<64x1xf32> to vector<64x512xf32>
    %60 = arith.addf %58, %59 : vector<64x512xf32>
    %cst_14 = arith.constant 0.000000e+00 : f32
    %61 = vector.broadcast %cst_14 : f32 to vector<64x512xf32>
    %62 = arith.maximumf %60, %61 : vector<64x512xf32>
    %c0_15 = arith.constant 0 : index
    %c0_16 = arith.constant 0 : index
    %c0_17 = arith.constant 0 : index
    %63 = vector.load %arg4[%c0_15, %c0_16, %c0_17] : memref<2x32x64xf32, #tpu.memory_space<vmem>>, vector<1x32x64xf32>
    %64 = vector.shape_cast %63 : vector<1x32x64xf32> to vector<32x64xf32>
    %cst_18 = arith.constant dense<0.000000e+00> : vector<32x512xf32>
    %65 = tpu.matmul %64, %62, %cst_18 {dimension_numbers = #tpu.dot_dimension_numbers<[1], [0], [0], [1], [0, 0, 1, 1], [], []>} : vector<32x64xf32>, vector<64x512xf32>, vector<32x512xf32> -> vector<32x512xf32>
    %66 = vector.broadcast %29 : vector<32x1xf32> to vector<32x512xf32>
    %67 = arith.addf %65, %66 : vector<32x512xf32>
    %68 = arith.addf %55, %67 : vector<32x512xf32>
    %cst_19 = arith.constant dense<0.000000e+00> : vector<512xf32>
    %69 = vector.multi_reduction <add>, %68, %cst_19 [0] : vector<32x512xf32> to vector<512xf32>
    %70 = vector.shape_cast %69 : vector<512xf32> to vector<1x512xf32>
    %cst_20 = arith.constant 3.200000e+01 : f32
    %71 = vector.broadcast %cst_20 : f32 to vector<1x512xf32>
    %72 = arith.divf %70, %71 : vector<1x512xf32>
    %73 = arith.mulf %68, %68 : vector<32x512xf32>
    %cst_21 = arith.constant dense<0.000000e+00> : vector<512xf32>
    %74 = vector.multi_reduction <add>, %73, %cst_21 [0] : vector<32x512xf32> to vector<512xf32>
    %75 = vector.shape_cast %74 : vector<512xf32> to vector<1x512xf32>
    %cst_22 = arith.constant 3.200000e+01 : f32
    %76 = vector.broadcast %cst_22 : f32 to vector<1x512xf32>
    %77 = arith.divf %75, %76 : vector<1x512xf32>
    %78 = arith.mulf %72, %72 : vector<1x512xf32>
    %79 = arith.subf %77, %78 : vector<1x512xf32>
    %80 = vector.broadcast %72 : vector<1x512xf32> to vector<32x512xf32>
    %81 = arith.subf %68, %80 : vector<32x512xf32>
    %cst_23 = arith.constant 9.99999974E-6 : f32
    %82 = vector.broadcast %cst_23 : f32 to vector<1x512xf32>
    %83 = arith.addf %79, %82 : vector<1x512xf32>
    %84 = math.rsqrt %83 : vector<1x512xf32>
    %85 = vector.broadcast %84 : vector<1x512xf32> to vector<32x512xf32>
    %86 = arith.mulf %81, %85 : vector<32x512xf32>
    %87 = vector.broadcast %32 : vector<32x1xf32> to vector<32x512xf32>
    %88 = arith.mulf %86, %87 : vector<32x512xf32>
    %89 = vector.broadcast %33 : vector<32x1xf32> to vector<32x512xf32>
    %90 = arith.addf %88, %89 : vector<32x512xf32>
    %c16_i32_24 = arith.constant 16 : i32
    %91 = tpu.dynamic_rotate %90 by %c16_i32_24 dim 1 : vector<32x512xf32>, i32 -> vector<32x512xf32>
    %92 = vector.broadcast %2 : vector<1x512xf32> to vector<32x512xf32>
    %93 = arith.mulf %92, %91 : vector<32x512xf32>
    %94 = arith.addf %90, %93 : vector<32x512xf32>
    %c496_i32_25 = arith.constant 496 : i32
    %95 = tpu.dynamic_rotate %90 by %c496_i32_25 dim 1 : vector<32x512xf32>, i32 -> vector<32x512xf32>
    %96 = vector.broadcast %3 : vector<1x512xf32> to vector<32x512xf32>
    %97 = arith.mulf %96, %95 : vector<32x512xf32>
    %98 = arith.addf %94, %97 : vector<32x512xf32>
    %c1_i32_26 = arith.constant 1 : i32
    %99 = tpu.dynamic_rotate %98 by %c1_i32_26 dim 1 : vector<32x512xf32>, i32 -> vector<32x512xf32>
    %100 = vector.broadcast %4 : vector<1x512xf32> to vector<32x512xf32>
    %101 = arith.mulf %100, %99 : vector<32x512xf32>
    %102 = arith.addf %98, %101 : vector<32x512xf32>
    %c511_i32_27 = arith.constant 511 : i32
    %103 = tpu.dynamic_rotate %98 by %c511_i32_27 dim 1 : vector<32x512xf32>, i32 -> vector<32x512xf32>
    %104 = vector.broadcast %5 : vector<1x512xf32> to vector<32x512xf32>
    %105 = arith.mulf %104, %103 : vector<32x512xf32>
    %106 = arith.addf %102, %105 : vector<32x512xf32>
    %107 = vector.broadcast %6 : vector<1x512xf32> to vector<32x512xf32>
    %108 = arith.mulf %106, %107 : vector<32x512xf32>
    %109 = arith.addf %90, %108 : vector<32x512xf32>
    %c1 = arith.constant 1 : index
    %c0_28 = arith.constant 0 : index
    %c0_29 = arith.constant 0 : index
    %110 = vector.load %arg5[%c1, %c0_28, %c0_29] : memref<2x224x1xf32, #tpu.memory_space<vmem>>, vector<1x224x1xf32>
    %111 = vector.shape_cast %110 : vector<1x224x1xf32> to vector<224x1xf32>
    %112 = vector.extract_strided_slice %111 {offsets = [0, 0], sizes = [64, 1], strides = [1, 1]} : vector<224x1xf32> to vector<64x1xf32>
    %113 = vector.extract_strided_slice %111 {offsets = [64, 0], sizes = [32, 1], strides = [1, 1]} : vector<224x1xf32> to vector<32x1xf32>
    %114 = vector.extract_strided_slice %111 {offsets = [96, 0], sizes = [32, 1], strides = [1, 1]} : vector<224x1xf32> to vector<32x1xf32>
    %115 = vector.extract_strided_slice %111 {offsets = [128, 0], sizes = [32, 1], strides = [1, 1]} : vector<224x1xf32> to vector<32x1xf32>
    %116 = vector.extract_strided_slice %111 {offsets = [160, 0], sizes = [32, 1], strides = [1, 1]} : vector<224x1xf32> to vector<32x1xf32>
    %117 = vector.extract_strided_slice %111 {offsets = [192, 0], sizes = [32, 1], strides = [1, 1]} : vector<224x1xf32> to vector<32x1xf32>
    %cst_30 = arith.constant dense<0.000000e+00> : vector<512xf32>
    %118 = vector.multi_reduction <add>, %109, %cst_30 [0] : vector<32x512xf32> to vector<512xf32>
    %119 = vector.shape_cast %118 : vector<512xf32> to vector<1x512xf32>
    %cst_31 = arith.constant 3.200000e+01 : f32
    %120 = vector.broadcast %cst_31 : f32 to vector<1x512xf32>
    %121 = arith.divf %119, %120 : vector<1x512xf32>
    %122 = arith.mulf %109, %109 : vector<32x512xf32>
    %cst_32 = arith.constant dense<0.000000e+00> : vector<512xf32>
    %123 = vector.multi_reduction <add>, %122, %cst_32 [0] : vector<32x512xf32> to vector<512xf32>
    %124 = vector.shape_cast %123 : vector<512xf32> to vector<1x512xf32>
    %cst_33 = arith.constant 3.200000e+01 : f32
    %125 = vector.broadcast %cst_33 : f32 to vector<1x512xf32>
    %126 = arith.divf %124, %125 : vector<1x512xf32>
    %127 = arith.mulf %121, %121 : vector<1x512xf32>
    %128 = arith.subf %126, %127 : vector<1x512xf32>
    %129 = vector.broadcast %121 : vector<1x512xf32> to vector<32x512xf32>
    %130 = arith.subf %109, %129 : vector<32x512xf32>
    %cst_34 = arith.constant 9.99999974E-6 : f32
    %131 = vector.broadcast %cst_34 : f32 to vector<1x512xf32>
    %132 = arith.addf %128, %131 : vector<1x512xf32>
    %133 = math.rsqrt %132 : vector<1x512xf32>
    %134 = vector.broadcast %133 : vector<1x512xf32> to vector<32x512xf32>
    %135 = arith.mulf %130, %134 : vector<32x512xf32>
    %136 = vector.broadcast %114 : vector<32x1xf32> to vector<32x512xf32>
    %137 = arith.mulf %135, %136 : vector<32x512xf32>
    %138 = vector.broadcast %115 : vector<32x1xf32> to vector<32x512xf32>
    %139 = arith.addf %137, %138 : vector<32x512xf32>
    %c1_35 = arith.constant 1 : index
    %c0_36 = arith.constant 0 : index
    %c0_37 = arith.constant 0 : index
    %140 = vector.load %arg3[%c1_35, %c0_36, %c0_37] : memref<2x64x32xf32, #tpu.memory_space<vmem>>, vector<1x64x32xf32>
    %141 = vector.shape_cast %140 : vector<1x64x32xf32> to vector<64x32xf32>
    %cst_38 = arith.constant dense<0.000000e+00> : vector<64x512xf32>
    %142 = tpu.matmul %141, %139, %cst_38 {dimension_numbers = #tpu.dot_dimension_numbers<[1], [0], [0], [1], [0, 0, 1, 1], [], []>} : vector<64x32xf32>, vector<32x512xf32>, vector<64x512xf32> -> vector<64x512xf32>
    %143 = vector.broadcast %112 : vector<64x1xf32> to vector<64x512xf32>
    %144 = arith.addf %142, %143 : vector<64x512xf32>
    %cst_39 = arith.constant 0.000000e+00 : f32
    %145 = vector.broadcast %cst_39 : f32 to vector<64x512xf32>
    %146 = arith.maximumf %144, %145 : vector<64x512xf32>
    %c1_40 = arith.constant 1 : index
    %c0_41 = arith.constant 0 : index
    %c0_42 = arith.constant 0 : index
    %147 = vector.load %arg4[%c1_40, %c0_41, %c0_42] : memref<2x32x64xf32, #tpu.memory_space<vmem>>, vector<1x32x64xf32>
    %148 = vector.shape_cast %147 : vector<1x32x64xf32> to vector<32x64xf32>
    %cst_43 = arith.constant dense<0.000000e+00> : vector<32x512xf32>
    %149 = tpu.matmul %148, %146, %cst_43 {dimension_numbers = #tpu.dot_dimension_numbers<[1], [0], [0], [1], [0, 0, 1, 1], [], []>} : vector<32x64xf32>, vector<64x512xf32>, vector<32x512xf32> -> vector<32x512xf32>
    %150 = vector.broadcast %113 : vector<32x1xf32> to vector<32x512xf32>
    %151 = arith.addf %149, %150 : vector<32x512xf32>
    %152 = arith.addf %139, %151 : vector<32x512xf32>
    %cst_44 = arith.constant dense<0.000000e+00> : vector<512xf32>
    %153 = vector.multi_reduction <add>, %152, %cst_44 [0] : vector<32x512xf32> to vector<512xf32>
    %154 = vector.shape_cast %153 : vector<512xf32> to vector<1x512xf32>
    %cst_45 = arith.constant 3.200000e+01 : f32
    %155 = vector.broadcast %cst_45 : f32 to vector<1x512xf32>
    %156 = arith.divf %154, %155 : vector<1x512xf32>
    %157 = arith.mulf %152, %152 : vector<32x512xf32>
    %cst_46 = arith.constant dense<0.000000e+00> : vector<512xf32>
    %158 = vector.multi_reduction <add>, %157, %cst_46 [0] : vector<32x512xf32> to vector<512xf32>
    %159 = vector.shape_cast %158 : vector<512xf32> to vector<1x512xf32>
    %cst_47 = arith.constant 3.200000e+01 : f32
    %160 = vector.broadcast %cst_47 : f32 to vector<1x512xf32>
    %161 = arith.divf %159, %160 : vector<1x512xf32>
    %162 = arith.mulf %156, %156 : vector<1x512xf32>
    %163 = arith.subf %161, %162 : vector<1x512xf32>
    %164 = vector.broadcast %156 : vector<1x512xf32> to vector<32x512xf32>
    %165 = arith.subf %152, %164 : vector<32x512xf32>
    %cst_48 = arith.constant 9.99999974E-6 : f32
    %166 = vector.broadcast %cst_48 : f32 to vector<1x512xf32>
    %167 = arith.addf %163, %166 : vector<1x512xf32>
    %168 = math.rsqrt %167 : vector<1x512xf32>
    %169 = vector.broadcast %168 : vector<1x512xf32> to vector<32x512xf32>
    %170 = arith.mulf %165, %169 : vector<32x512xf32>
    %171 = vector.broadcast %116 : vector<32x1xf32> to vector<32x512xf32>
    %172 = arith.mulf %170, %171 : vector<32x512xf32>
    %173 = vector.broadcast %117 : vector<32x1xf32> to vector<32x512xf32>
    %174 = arith.addf %172, %173 : vector<32x512xf32>
    %c0_49 = arith.constant 0 : index
    %c0_50 = arith.constant 0 : index
    %175 = vector.load %arg6[%c0_49, %c0_50] : memref<32x512xf32, #tpu.memory_space<vmem>>, vector<32x512xf32>
    tpu.vector_store %arg6[%c0_49, %c0_50], %174 {strides = array<i32>} : memref<32x512xf32, #tpu.memory_space<vmem>>, vector<32x512xf32>,
    return
  }
  func.func @transform_0(%arg0: i32) -> (i32, i32) {
    %c0_i32 = arith.constant 0 : i32
    %c0_i32_0 = arith.constant 0 : i32
    %c0_i32_1 = arith.constant 0 : i32
    return %c0_i32, %c0_i32_0 : i32, i32
  }
  func.func @transform_1(%arg0: i32) -> (i32, i32) {
    %c0_i32 = arith.constant 0 : i32
    %c0_i32_0 = arith.constant 0 : i32
    %c0_i32_1 = arith.constant 0 : i32
    return %c0_i32, %c0_i32_0 : i32, i32
  }
  func.func @transform_2(%arg0: i32) -> (i32, i32, i32) {
    %c0_i32 = arith.constant 0 : i32
    %c0_i32_0 = arith.constant 0 : i32
    %c0_i32_1 = arith.constant 0 : i32
    %c0_i32_2 = arith.constant 0 : i32
    return %c0_i32, %c0_i32_0, %c0_i32_1 : i32, i32, i32
  }
  func.func @transform_3(%arg0: i32) -> (i32, i32, i32) {
    %c0_i32 = arith.constant 0 : i32
    %c0_i32_0 = arith.constant 0 : i32
    %c0_i32_1 = arith.constant 0 : i32
    %c0_i32_2 = arith.constant 0 : i32
    return %c0_i32, %c0_i32_0, %c0_i32_1 : i32, i32, i32
  }
  func.func @transform_4(%arg0: i32) -> (i32, i32, i32) {
    %c0_i32 = arith.constant 0 : i32
    %c0_i32_0 = arith.constant 0 : i32
    %c0_i32_1 = arith.constant 0 : i32
    %c0_i32_2 = arith.constant 0 : i32
    return %c0_i32, %c0_i32_0, %c0_i32_1 : i32, i32, i32
  }
  func.func @transform_5(%arg0: i32) -> (i32, i32) {
    %c0_i32 = arith.constant 0 : i32
    %c0_i32_0 = arith.constant 0 : i32
    %c0_i32_1 = arith.constant 0 : i32
    return %c0_i32, %c0_i32_0 : i32, i32
  }
}

</mosaic_0001>

<llo_original>
// kernel: win_encoder_transformer_forward.1
$region0: #{win_encoder_transformer_forward.1}
  #allocation0 [shape = 'u32[]', space=smem, size = 0x4, offset = 0x4, fixed_abs, tag = 'smem constant byte address 0x4 - core index']
  #allocation1 [shape = 'u32[72,128]{1,0:T(1,128)}', space=vmem, size = 0x9000, scoped, tag = 'internal scratch']
  %s0 = inlined_call_operand.vmem [shape: f32[32,512], index: 0, kind: input, shape index: {}]
  %s1 = inlined_call_operand.vmem [shape: f32[5,512], index: 1, kind: input, shape index: {}]
  %s2 = inlined_call_operand.vmem [shape: f32[2,64,32], index: 2, kind: input, shape index: {}]
  %s3 = inlined_call_operand.vmem [shape: f32[2,32,64], index: 3, kind: input, shape index: {}]
  %s4 = inlined_call_operand.vmem [shape: f32[2,224,1], index: 4, kind: input, shape index: {}]
  %s5 = inlined_call_operand.vmem [shape: f32[32,512], index: 5, kind: output, shape index: {}]
  %s6 = sld [smem:[#allocation0]]
  $region30: #{win_encoder_transformer_forward.1} parent=0
    _
  %s8 = ssub.s32 1, %s6
  %s9 = scalar_select 0, %s8, %s6
  // Predicated region
  $region2: #{win_encoder_transformer_forward.1} parent=0 // pred_check
    _
  $region3: #{win_encoder_transformer_forward.1} parent=0 // pred_check_branch
    %11 = sbr.rel (0) target = $region5
  $region4: #{win_encoder_transformer_forward.1} parent=0 // pred_region
    _
  $region5: #{win_encoder_transformer_forward.1} parent=0 // pred_fallthru
    _
  // Predicated region
  $region6: #{win_encoder_transformer_forward.1} parent=0 // pred_check
    _
  $region7: #{win_encoder_transformer_forward.1} parent=0 // pred_check_branch
    %13 = sbr.rel (0) target = $region9
  $region8: #{win_encoder_transformer_forward.1} parent=0 // pred_region
    _
  $region9: #{win_encoder_transformer_forward.1} parent=0 // pred_fallthru
    _
  // Predicated region
  $region10: #{win_encoder_transformer_forward.1} parent=0 // pred_check
    _
  $region11: #{win_encoder_transformer_forward.1} parent=0 // pred_check_branch
    %15 = sbr.rel (0) target = $region13
  $region12: #{win_encoder_transformer_forward.1} parent=0 // pred_region
    _
  $region13: #{win_encoder_transformer_forward.1} parent=0 // pred_fallthru
    _
  // Predicated region
  $region14: #{win_encoder_transformer_forward.1} parent=0 // pred_check
    _
  $region15: #{win_encoder_transformer_forward.1} parent=0 // pred_check_branch
    %17 = sbr.rel (0) target = $region17
  $region16: #{win_encoder_transformer_forward.1} parent=0 // pred_region
    _
  $region17: #{win_encoder_transformer_forward.1} parent=0 // pred_fallthru
    _
  // Predicated region
  $region18: #{win_encoder_transformer_forward.1} parent=0 // pred_check
    _
  $region19: #{win_encoder_transformer_forward.1} parent=0 // pred_check_branch
    %19 = sbr.rel (0) target = $region21
  $region20: #{win_encoder_transformer_forward.1} parent=0 // pred_region
    _
  $region21: #{win_encoder_transformer_forward.1} parent=0 // pred_fallthru
    _
  %v20 = vld [vmem:[%s0] sm:$0xff]
  %v21 = vld [vmem:[%s0 + $0x8] sm:$0xff]
  %v22 = vld [vmem:[%s0 + $0x10] sm:$0xff]
  %v23 = vld [vmem:[%s0 + $0x18] sm:$0xff]
  %v24 = vld [vmem:[%s0 + $0x20] sm:$0xff]
  %v25 = vld [vmem:[%s0 + $0x28] sm:$0xff]
  %v26 = vld [vmem:[%s0 + $0x30] sm:$0xff]
  %v27 = vld [vmem:[%s0 + $0x38] sm:$0xff]
  %v28 = vld [vmem:[%s0 + $0x40] sm:$0xff]
  %v29 = vld [vmem:[%s0 + $0x48] sm:$0xff]
  %v30 = vld [vmem:[%s0 + $0x50] sm:$0xff]
  %v31 = vld [vmem:[%s0 + $0x58] sm:$0xff]
  %v32 = vld [vmem:[%s0 + $0x60] sm:$0xff]
  %v33 = vld [vmem:[%s0 + $0x68] sm:$0xff]
  %v34 = vld [vmem:[%s0 + $0x70] sm:$0xff]
  %v35 = vld [vmem:[%s0 + $0x78] sm:$0xff]
  %v36 = vld [vmem:[%s1] sm:$0x1f]
  %v37 = vld [vmem:[%s1 + $0x8] sm:$0x1f]
  %v38 = vld [vmem:[%s1 + $0x10] sm:$0x1f]
  %v39 = vld [vmem:[%s1 + $0x18] sm:$0x1f]
  %40 = vrot.lane.b32.xlu0 %v20, 16
  %v41 = vpop.permute.xlu0 %40
  %42 = vrot.lane.b32.xlu0 %v24, 16
  %v43 = vpop.permute.xlu0 %42
  %44 = vrot.lane.b32.xlu0 %v28, 16
  %v45 = vpop.permute.xlu0 %44
  %46 = vrot.lane.b32.xlu0 %v32, 16
  %v47 = vpop.permute.xlu0 %46
  %48 = vrot.lane.b32.xlu0 %v21, 16
  %v49 = vpop.permute.xlu0 %48
  %50 = vrot.lane.b32.xlu0 %v25, 16
  %v51 = vpop.permute.xlu0 %50
  %52 = vrot.lane.b32.xlu0 %v29, 16
  %v53 = vpop.permute.xlu0 %52
  %54 = vrot.lane.b32.xlu0 %v33, 16
  %v55 = vpop.permute.xlu0 %54
  %56 = vrot.lane.b32.xlu0 %v22, 16
  %v57 = vpop.permute.xlu0 %56
  %58 = vrot.lane.b32.xlu0 %v26, 16
  %v59 = vpop.permute.xlu0 %58
  %60 = vrot.lane.b32.xlu0 %v30, 16
  %v61 = vpop.permute.xlu0 %60
  %62 = vrot.lane.b32.xlu0 %v34, 16
  %v63 = vpop.permute.xlu0 %62
  %64 = vrot.lane.b32.xlu0 %v23, 16
  %v65 = vpop.permute.xlu0 %64
  %66 = vrot.lane.b32.xlu0 %v27, 16
  %v67 = vpop.permute.xlu0 %66
  %68 = vrot.lane.b32.xlu0 %v31, 16
  %v69 = vpop.permute.xlu0 %68
  %70 = vrot.lane.b32.xlu0 %v35, 16
  %v71 = vpop.permute.xlu0 %70
  %v72 = vlaneseq
  %v73 = vand.u32 %v72, 127
  %vm74 = vcmp.lt.s32.totalorder %v73, 16
  %v75 = vsel %vm74, %v57, %v65
  %v76 = vsel %vm74, %v59, %v67
  %v77 = vsel %vm74, %v61, %v69
  %v78 = vsel %vm74, %v63, %v71
  %v79 = vsel %vm74, %v49, %v57
  %v80 = vsel %vm74, %v51, %v59
  %v81 = vsel %vm74, %v53, %v61
  %v82 = vsel %vm74, %v55, %v63
  %v83 = vsel %vm74, %v41, %v49
  %v84 = vsel %vm74, %v43, %v51
  %v85 = vsel %vm74, %v45, %v53
  %v86 = vsel %vm74, %v47, %v55
  %v87 = vsel %vm74, %v65, %v41
  %v88 = vsel %vm74, %v67, %v43
  %v89 = vsel %vm74, %v69, %v45
  %v90 = vsel %vm74, %v71, %v47
  %v91 = vperm.slane %v36, 0
  %v92 = vperm.slane %v37, 0
  %v93 = vperm.slane %v38, 0
  %v94 = vperm.slane %v39, 0
  %v95 = vmul.f32 %v91, %v87
  %v96 = vmul.f32 %v92, %v83
  %v97 = vmul.f32 %v93, %v79
  %v98 = vmul.f32 %v94, %v75
  %v99 = vmul.f32 %v91, %v88
  %v100 = vmul.f32 %v92, %v84
  %v101 = vmul.f32 %v93, %v80
  %v102 = vmul.f32 %v94, %v76
  %v103 = vmul.f32 %v91, %v89
  %v104 = vmul.f32 %v92, %v85
  %v105 = vmul.f32 %v93, %v81
  %v106 = vmul.f32 %v94, %v77
  %v107 = vmul.f32 %v91, %v90
  %v108 = vmul.f32 %v92, %v86
  %v109 = vmul.f32 %v93, %v82
  %v110 = vmul.f32 %v94, %v78
  %v111 = vadd.f32 %v20, %v95
  %v112 = vadd.f32 %v21, %v96
  %v113 = vadd.f32 %v22, %v97
  %v114 = vadd.f32 %v23, %v98
  %v115 = vadd.f32 %v24, %v99
  %v116 = vadd.f32 %v25, %v100
  %v117 = vadd.f32 %v26, %v101
  %v118 = vadd.f32 %v27, %v102
  %v119 = vadd.f32 %v28, %v103
  %v120 = vadd.f32 %v29, %v104
  %v121 = vadd.f32 %v30, %v105
  %v122 = vadd.f32 %v31, %v106
  %v123 = vadd.f32 %v32, %v107
  %v124 = vadd.f32 %v33, %v108
  %v125 = vadd.f32 %v34, %v109
  %v126 = vadd.f32 %v35, %v110
  %127 = vrot.lane.b32.xlu0 %v20, 112
  %v128 = vpop.permute.xlu0 %127
  %129 = vrot.lane.b32.xlu0 %v24, 112
  %v130 = vpop.permute.xlu0 %129
  %131 = vrot.lane.b32.xlu0 %v28, 112
  %v132 = vpop.permute.xlu0 %131
  %133 = vrot.lane.b32.xlu0 %v32, 112
  %v134 = vpop.permute.xlu0 %133
  %135 = vrot.lane.b32.xlu0 %v21, 112
  %v136 = vpop.permute.xlu0 %135
  %137 = vrot.lane.b32.xlu0 %v25, 112
  %v138 = vpop.permute.xlu0 %137
  %139 = vrot.lane.b32.xlu0 %v29, 112
  %v140 = vpop.permute.xlu0 %139
  %141 = vrot.lane.b32.xlu0 %v33, 112
  %v142 = vpop.permute.xlu0 %141
  %143 = vrot.lane.b32.xlu0 %v22, 112
  %v144 = vpop.permute.xlu0 %143
  %145 = vrot.lane.b32.xlu0 %v26, 112
  %v146 = vpop.permute.xlu0 %145
  %147 = vrot.lane.b32.xlu0 %v30, 112
  %v148 = vpop.permute.xlu0 %147
  %149 = vrot.lane.b32.xlu0 %v34, 112
  %v150 = vpop.permute.xlu0 %149
  %151 = vrot.lane.b32.xlu0 %v23, 112
  %v152 = vpop.permute.xlu0 %151
  %153 = vrot.lane.b32.xlu0 %v27, 112
  %v154 = vpop.permute.xlu0 %153
  %155 = vrot.lane.b32.xlu0 %v31, 112
  %v156 = vpop.permute.xlu0 %155
  %157 = vrot.lane.b32.xlu0 %v35, 112
  %v158 = vpop.permute.xlu0 %157
  %vm159 = vcmp.lt.s32.totalorder %v73, 112
  %v160 = vsel %vm159, %v144, %v152
  %v161 = vsel %vm159, %v146, %v154
  %v162 = vsel %vm159, %v148, %v156
  %v163 = vsel %vm159, %v150, %v158
  %v164 = vsel %vm159, %v136, %v144
  %v165 = vsel %vm159, %v138, %v146
  %v166 = vsel %vm159, %v140, %v148
  %v167 = vsel %vm159, %v142, %v150
  %v168 = vsel %vm159, %v128, %v136
  %v169 = vsel %vm159, %v130, %v138
  %v170 = vsel %vm159, %v132, %v140
  %v171 = vsel %vm159, %v134, %v142
  %v172 = vsel %vm159, %v152, %v128
  %v173 = vsel %vm159, %v154, %v130
  %v174 = vsel %vm159, %v156, %v132
  %v175 = vsel %vm159, %v158, %v134
  %v176 = vperm.slane %v36, 1
  %v177 = vperm.slane %v37, 1
  %v178 = vperm.slane %v38, 1
  %v179 = vperm.slane %v39, 1
  %v180 = vmul.f32 %v176, %v168
  %v181 = vmul.f32 %v177, %v164
  %v182 = vmul.f32 %v178, %v160
  %v183 = vmul.f32 %v179, %v172
  %v184 = vmul.f32 %v176, %v169
  %v185 = vmul.f32 %v177, %v165
  %v186 = vmul.f32 %v178, %v161
  %v187 = vmul.f32 %v179, %v173
  %v188 = vmul.f32 %v176, %v170
  %v189 = vmul.f32 %v177, %v166
  %v190 = vmul.f32 %v178, %v162
  %v191 = vmul.f32 %v179, %v174
  %v192 = vmul.f32 %v176, %v171
  %v193 = vmul.f32 %v177, %v167
  %v194 = vmul.f32 %v178, %v163
  %v195 = vmul.f32 %v179, %v175
  %v196 = vadd.f32 %v111, %v180
  %v197 = vadd.f32 %v112, %v181
  %v198 = vadd.f32 %v113, %v182
  %v199 = vadd.f32 %v114, %v183
  %v200 = vadd.f32 %v115, %v184
  %v201 = vadd.f32 %v116, %v185
  %v202 = vadd.f32 %v117, %v186
  %v203 = vadd.f32 %v118, %v187
  %v204 = vadd.f32 %v119, %v188
  %v205 = vadd.f32 %v120, %v189
  %v206 = vadd.f32 %v121, %v190
  %v207 = vadd.f32 %v122, %v191
  %v208 = vadd.f32 %v123, %v192
  %v209 = vadd.f32 %v124, %v193
  %v210 = vadd.f32 %v125, %v194
  %v211 = vadd.f32 %v126, %v195
  %212 = vrot.lane.b32.xlu0 %v196, 1
  %v213 = vpop.permute.xlu0 %212
  %214 = vrot.lane.b32.xlu0 %v200, 1
  %v215 = vpop.permute.xlu0 %214
  %216 = vrot.lane.b32.xlu0 %v204, 1
  %v217 = vpop.permute.xlu0 %216
  %218 = vrot.lane.b32.xlu0 %v208, 1
  %v219 = vpop.permute.xlu0 %218
  %220 = vrot.lane.b32.xlu0 %v197, 1
  %v221 = vpop.permute.xlu0 %220
  %222 = vrot.lane.b32.xlu0 %v201, 1
  %v223 = vpop.permute.xlu0 %222
  %224 = vrot.lane.b32.xlu0 %v205, 1
  %v225 = vpop.permute.xlu0 %224
  %226 = vrot.lane.b32.xlu0 %v209, 1
  %v227 = vpop.permute.xlu0 %226
  %228 = vrot.lane.b32.xlu0 %v198, 1
  %v229 = vpop.permute.xlu0 %228
  %230 = vrot.lane.b32.xlu0 %v202, 1
  %v231 = vpop.permute.xlu0 %230
  %232 = vrot.lane.b32.xlu0 %v206, 1
  %v233 = vpop.permute.xlu0 %232
  %234 = vrot.lane.b32.xlu0 %v210, 1
  %v235 = vpop.permute.xlu0 %234
  %236 = vrot.lane.b32.xlu0 %v199, 1
  %v237 = vpop.permute.xlu0 %236
  %238 = vrot.lane.b32.xlu0 %v203, 1
  %v239 = vpop.permute.xlu0 %238
  %240 = vrot.lane.b32.xlu0 %v207, 1
  %v241 = vpop.permute.xlu0 %240
  %242 = vrot.lane.b32.xlu0 %v211, 1
  %v243 = vpop.permute.xlu0 %242
  %vm244 = vcmp.lt.s32.totalorder %v73, 1
  %v245 = vsel %vm244, %v229, %v237
  %v246 = vsel %vm244, %v231, %v239
  %v247 = vsel %vm244, %v233, %v241
  %v248 = vsel %vm244, %v235, %v243
  %v249 = vsel %vm244, %v221, %v229
  %v250 = vsel %vm244, %v223, %v231
  %v251 = vsel %vm244, %v225, %v233
  %v252 = vsel %vm244, %v227, %v235
  %v253 = vsel %vm244, %v213, %v221
  %v254 = vsel %vm244, %v215, %v223
  %v255 = vsel %vm244, %v217, %v225
  %v256 = vsel %vm244, %v219, %v227
  %v257 = vsel %vm244, %v237, %v213
  %v258 = vsel %vm244, %v239, %v215
  %v259 = vsel %vm244, %v241, %v217
  %v260 = vsel %vm244, %v243, %v219
  %v261 = vperm.slane %v36, 2
  %v262 = vperm.slane %v37, 2
  %v263 = vperm.slane %v38, 2
  %v264 = vperm.slane %v39, 2
  %v265 = vmul.f32 %v261, %v257
  %v266 = vmul.f32 %v262, %v253
  %v267 = vmul.f32 %v263, %v249
  %v268 = vmul.f32 %v264, %v245
  %v269 = vmul.f32 %v261, %v258
  %v270 = vmul.f32 %v262, %v254
  %v271 = vmul.f32 %v263, %v250
  %v272 = vmul.f32 %v264, %v246
  %v273 = vmul.f32 %v261, %v259
  %v274 = vmul.f32 %v262, %v255
  %v275 = vmul.f32 %v263, %v251
  %v276 = vmul.f32 %v264, %v247
  %v277 = vmul.f32 %v261, %v260
  %v278 = vmul.f32 %v262, %v256
  %v279 = vmul.f32 %v263, %v252
  %v280 = vmul.f32 %v264, %v248
  %v281 = vadd.f32 %v196, %v265
  %v282 = vadd.f32 %v197, %v266
  %v283 = vadd.f32 %v198, %v267
  %v284 = vadd.f32 %v199, %v268
  %v285 = vadd.f32 %v200, %v269
  %v286 = vadd.f32 %v201, %v270
  %v287 = vadd.f32 %v202, %v271
  %v288 = vadd.f32 %v203, %v272
  %v289 = vadd.f32 %v204, %v273
  %v290 = vadd.f32 %v205, %v274
  %v291 = vadd.f32 %v206, %v275
  %v292 = vadd.f32 %v207, %v276
  %v293 = vadd.f32 %v208, %v277
  %v294 = vadd.f32 %v209, %v278
  %v295 = vadd.f32 %v210, %v279
  %v296 = vadd.f32 %v211, %v280
  %297 = vrot.lane.b32.xlu0 %v196, 127
  %v298 = vpop.permute.xlu0 %297
  %299 = vrot.lane.b32.xlu0 %v200, 127
  %v300 = vpop.permute.xlu0 %299
  %301 = vrot.lane.b32.xlu0 %v204, 127
  %v302 = vpop.permute.xlu0 %301
  %303 = vrot.lane.b32.xlu0 %v208, 127
  %v304 = vpop.permute.xlu0 %303
  %305 = vrot.lane.b32.xlu0 %v197, 127
  %v306 = vpop.permute.xlu0 %305
  %307 = vrot.lane.b32.xlu0 %v201, 127
  %v308 = vpop.permute.xlu0 %307
  %309 = vrot.lane.b32.xlu0 %v205, 127
  %v310 = vpop.permute.xlu0 %309
  %311 = vrot.lane.b32.xlu0 %v209, 127
  %v312 = vpop.permute.xlu0 %311
  %313 = vrot.lane.b32.xlu0 %v198, 127
  %v314 = vpop.permute.xlu0 %313
  %315 = vrot.lane.b32.xlu0 %v202, 127
  %v316 = vpop.permute.xlu0 %315
  %317 = vrot.lane.b32.xlu0 %v206, 127
  %v318 = vpop.permute.xlu0 %317
  %319 = vrot.lane.b32.xlu0 %v210, 127
  %v320 = vpop.permute.xlu0 %319
  %321 = vrot.lane.b32.xlu0 %v199, 127
  %v322 = vpop.permute.xlu0 %321
  %323 = vrot.lane.b32.xlu0 %v203, 127
  %v324 = vpop.permute.xlu0 %323
  %325 = vrot.lane.b32.xlu0 %v207, 127
  %v326 = vpop.permute.xlu0 %325
  %327 = vrot.lane.b32.xlu0 %v211, 127
  %v328 = vpop.permute.xlu0 %327
  %vm329 = vcmp.lt.s32.totalorder %v73, 127
  %v330 = vsel %vm329, %v314, %v322
  %v331 = vsel %vm329, %v316, %v324
  %v332 = vsel %vm329, %v318, %v326
  %v333 = vsel %vm329, %v320, %v328
  %v334 = vsel %vm329, %v306, %v314
  %v335 = vsel %vm329, %v308, %v316
  %v336 = vsel %vm329, %v310, %v318
  %v337 = vsel %vm329, %v312, %v320
  %v338 = vsel %vm329, %v298, %v306
  %v339 = vsel %vm329, %v300, %v308
  %v340 = vsel %vm329, %v302, %v310
  %v341 = vsel %vm329, %v304, %v312
  %v342 = vsel %vm329, %v322, %v298
  %v343 = vsel %vm329, %v324, %v300
  %v344 = vsel %vm329, %v326, %v302
  %v345 = vsel %vm329, %v328, %v304
  %v346 = vperm.slane %v36, 3
  %v347 = vperm.slane %v37, 3
  %v348 = vperm.slane %v38, 3
  %v349 = vperm.slane %v39, 3
  %v350 = vmul.f32 %v346, %v338
  %v351 = vmul.f32 %v347, %v334
  %v352 = vmul.f32 %v348, %v330
  %v353 = vmul.f32 %v349, %v342
  %v354 = vmul.f32 %v346, %v339
  %v355 = vmul.f32 %v347, %v335
  %v356 = vmul.f32 %v348, %v331
  %v357 = vmul.f32 %v349, %v343
  %v358 = vmul.f32 %v346, %v340
  %v359 = vmul.f32 %v347, %v336
  %v360 = vmul.f32 %v348, %v332
  %v361 = vmul.f32 %v349, %v344
  %v362 = vmul.f32 %v346, %v341
  %v363 = vmul.f32 %v347, %v337
  %v364 = vmul.f32 %v348, %v333
  %v365 = vmul.f32 %v349, %v345
  %v366 = vadd.f32 %v281, %v350
  %v367 = vadd.f32 %v282, %v351
  %v368 = vadd.f32 %v283, %v352
  %v369 = vadd.f32 %v284, %v353
  %v370 = vadd.f32 %v285, %v354
  %v371 = vadd.f32 %v286, %v355
  %v372 = vadd.f32 %v287, %v356
  %v373 = vadd.f32 %v288, %v357
  %v374 = vadd.f32 %v289, %v358
  %v375 = vadd.f32 %v290, %v359
  %v376 = vadd.f32 %v291, %v360
  %v377 = vadd.f32 %v292, %v361
  %v378 = vadd.f32 %v293, %v362
  %v379 = vadd.f32 %v294, %v363
  %v380 = vadd.f32 %v295, %v364
  %v381 = vadd.f32 %v296, %v365
  %v382 = vperm.slane %v36, 4
  %v383 = vperm.slane %v37, 4
  %v384 = vperm.slane %v38, 4
  %v385 = vperm.slane %v39, 4
  %v386 = vmul.f32 %v366, %v382
  %v387 = vmul.f32 %v367, %v383
  %v388 = vmul.f32 %v368, %v384
  %v389 = vmul.f32 %v369, %v385
  %v390 = vmul.f32 %v370, %v382
  %v391 = vmul.f32 %v371, %v383
  %v392 = vmul.f32 %v372, %v384
  %v393 = vmul.f32 %v373, %v385
  %v394 = vmul.f32 %v374, %v382
  %v395 = vmul.f32 %v375, %v383
  %v396 = vmul.f32 %v376, %v384
  %v397 = vmul.f32 %v377, %v385
  %v398 = vmul.f32 %v378, %v382
  %v399 = vmul.f32 %v379, %v383
  %v400 = vmul.f32 %v380, %v384
  %v401 = vmul.f32 %v381, %v385
  %v402 = vadd.f32 %v20, %v386
  %v403 = vadd.f32 %v21, %v387
  %v404 = vadd.f32 %v22, %v388
  %v405 = vadd.f32 %v23, %v389
  %v406 = vadd.f32 %v24, %v390
  %v407 = vadd.f32 %v25, %v391
  %v408 = vadd.f32 %v26, %v392
  %v409 = vadd.f32 %v27, %v393
  %v410 = vadd.f32 %v28, %v394
  %v411 = vadd.f32 %v29, %v395
  %v412 = vadd.f32 %v30, %v396
  %v413 = vadd.f32 %v31, %v397
  %v414 = vadd.f32 %v32, %v398
  %v415 = vadd.f32 %v33, %v399
  %v416 = vadd.f32 %v34, %v400
  %v417 = vadd.f32 %v35, %v401
  %v418 = vld [vmem:[%s4] sm:$0xff]
  %v419 = vld [vmem:[%s4 + $0x8] sm:$0xff]
  %v420 = vld [vmem:[%s4 + $0x10] sm:$0xff]
  %v421 = vld [vmem:[%s4 + $0x18] sm:$0xff]
  %v422 = vld [vmem:[%s4 + $0x20] sm:$0xff]
  %v423 = vld [vmem:[%s4 + $0x28] sm:$0xff]
  %v424 = vld [vmem:[%s4 + $0x30] sm:$0xff]
  %v425 = vld [vmem:[%s4 + $0x38] sm:$0xff]
  %v426 = vld [vmem:[%s4 + $0x40] sm:$0xff]
  %v427 = vld [vmem:[%s4 + $0x48] sm:$0xff]
  %v428 = vld [vmem:[%s4 + $0x50] sm:$0xff]
  %v429 = vld [vmem:[%s4 + $0x58] sm:$0xff]
  %v430 = vld [vmem:[%s4 + $0x60] sm:$0xff]
  %v431 = vld [vmem:[%s4 + $0x68] sm:$0xff]
  %v432 = vld [vmem:[%s4 + $0x70] sm:$0xff]
  %v433 = vld [vmem:[%s4 + $0x78] sm:$0xff]
  %v434 = vld [vmem:[%s4 + $0x80] sm:$0xff]
  %v435 = vld [vmem:[%s4 + $0x88] sm:$0xff]
  %v436 = vld [vmem:[%s4 + $0x90] sm:$0xff]
  %v437 = vld [vmem:[%s4 + $0x98] sm:$0xff]
  %v438 = vld [vmem:[%s4 + $0xa0] sm:$0xff]
  %v439 = vld [vmem:[%s4 + $0xa8] sm:$0xff]
  %v440 = vld [vmem:[%s4 + $0xb0] sm:$0xff]
  %v441 = vld [vmem:[%s4 + $0xb8] sm:$0xff]
  %v442 = vld [vmem:[%s4 + $0xc0] sm:$0xff]
  %v443 = vld [vmem:[%s4 + $0xc8] sm:$0xff]
  %v444 = vld [vmem:[%s4 + $0xd0] sm:$0xff]
  %v445 = vld [vmem:[%s4 + $0xd8] sm:$0xff]
  %v446 = vadd.f32 %v402, %v406
  %v447 = vadd.f32 %v446, %v410
  %v448 = vadd.f32 %v447, %v414
  %v449 = vrot.slane %v448, 4
  %v450 = vadd.f32 %v448, %v449
  %v451 = vrot.slane %v450, 2
  %v452 = vadd.f32 %v450, %v451
  %v453 = vrot.slane %v452, 1
  %v454 = vadd.f32 %v452, %v453
  %v455 = vadd.f32 %v403, %v407
  %v456 = vadd.f32 %v455, %v411
  %v457 = vadd.f32 %v456, %v415
  %v458 = vrot.slane %v457, 4
  %v459 = vadd.f32 %v457, %v458
  %v460 = vrot.slane %v459, 2
  %v461 = vadd.f32 %v459, %v460
  %v462 = vrot.slane %v461, 1
  %v463 = vadd.f32 %v461, %v462
  %v464 = vadd.f32 %v404, %v408
  %v465 = vadd.f32 %v464, %v412
  %v466 = vadd.f32 %v465, %v416
  %v467 = vrot.slane %v466, 4
  %v468 = vadd.f32 %v466, %v467
  %v469 = vrot.slane %v468, 2
  %v470 = vadd.f32 %v468, %v469
  %v471 = vrot.slane %v470, 1
  %v472 = vadd.f32 %v470, %v471
  %v473 = vadd.f32 %v405, %v409
  %v474 = vadd.f32 %v473, %v413
  %v475 = vadd.f32 %v474, %v417
  %v476 = vrot.slane %v475, 4
  %v477 = vadd.f32 %v475, %v476
  %v478 = vrot.slane %v477, 2
  %v479 = vadd.f32 %v477, %v478
  %v480 = vrot.slane %v479, 1
  %v481 = vadd.f32 %v479, %v480
  %v482 = vrcp.pop 32.0
  %v483 = vmul.f32 32.0, %v482
  %v484 = vsub.f32 1.0, %v483
  %v485 = vmul.f32 %v482, %v484
  %v486 = vadd.f32 %v482, %v485
  %vm487 = vweird.f32 %v482
  %v488 = vsel %vm487, %v482, %v486
  %v489 = vmul.f32 %v454, %v488
  %v490 = vmul.f32 %v463, %v488
  %v491 = vmul.f32 %v472, %v488
  %v492 = vmul.f32 %v481, %v488
  %v493 = vmul.f32 %v402, %v402
  %v494 = vmul.f32 %v403, %v403
  %v495 = vmul.f32 %v404, %v404
  %v496 = vmul.f32 %v405, %v405
  %v497 = vmul.f32 %v406, %v406
  %v498 = vmul.f32 %v407, %v407
  %v499 = vmul.f32 %v408, %v408
  %v500 = vmul.f32 %v409, %v409
  %v501 = vmul.f32 %v410, %v410
  %v502 = vmul.f32 %v411, %v411
  %v503 = vmul.f32 %v412, %v412
  %v504 = vmul.f32 %v413, %v413
  %v505 = vmul.f32 %v414, %v414
  %v506 = vmul.f32 %v415, %v415
  %v507 = vmul.f32 %v416, %v416
  %v508 = vmul.f32 %v417, %v417
  %v509 = vadd.f32 %v493, %v497
  %v510 = vadd.f32 %v509, %v501
  %v511 = vadd.f32 %v510, %v505
  %v512 = vrot.slane %v511, 4
  %v513 = vadd.f32 %v511, %v512
  %v514 = vrot.slane %v513, 2
  %v515 = vadd.f32 %v513, %v514
  %v516 = vrot.slane %v515, 1
  %v517 = vadd.f32 %v515, %v516
  %v518 = vadd.f32 %v494, %v498
  %v519 = vadd.f32 %v518, %v502
  %v520 = vadd.f32 %v519, %v506
  %v521 = vrot.slane %v520, 4
  %v522 = vadd.f32 %v520, %v521
  %v523 = vrot.slane %v522, 2
  %v524 = vadd.f32 %v522, %v523
  %v525 = vrot.slane %v524, 1
  %v526 = vadd.f32 %v524, %v525
  %v527 = vadd.f32 %v495, %v499
  %v528 = vadd.f32 %v527, %v503
  %v529 = vadd.f32 %v528, %v507
  %v530 = vrot.slane %v529, 4
  %v531 = vadd.f32 %v529, %v530
  %v532 = vrot.slane %v531, 2
  %v533 = vadd.f32 %v531, %v532
  %v534 = vrot.slane %v533, 1
  %v535 = vadd.f32 %v533, %v534
  %v536 = vadd.f32 %v496, %v500
  %v537 = vadd.f32 %v536, %v504
  %v538 = vadd.f32 %v537, %v508
  %v539 = vrot.slane %v538, 4
  %v540 = vadd.f32 %v538, %v539
  %v541 = vrot.slane %v540, 2
  %v542 = vadd.f32 %v540, %v541
  %v543 = vrot.slane %v542, 1
  %v544 = vadd.f32 %v542, %v543
  %v545 = vmul.f32 %v517, %v488
  %v546 = vmul.f32 %v526, %v488
  %v547 = vmul.f32 %v535, %v488
  %v548 = vmul.f32 %v544, %v488
  %v549 = vmul.f32 %v489, %v489
  %v550 = vmul.f32 %v490, %v490
  %v551 = vmul.f32 %v491, %v491
  %v552 = vmul.f32 %v492, %v492
  %v553 = vsub.f32 %v545, %v549
  %v554 = vsub.f32 %v546, %v550
  %v555 = vsub.f32 %v547, %v551
  %v556 = vsub.f32 %v548, %v552
  %v557 = vsub.f32 %v402, %v489
  %v558 = vsub.f32 %v403, %v490
  %v559 = vsub.f32 %v404, %v491
  %v560 = vsub.f32 %v405, %v492
  %v561 = vsub.f32 %v406, %v489
  %v562 = vsub.f32 %v407, %v490
  %v563 = vsub.f32 %v408, %v491
  %v564 = vsub.f32 %v409, %v492
  %v565 = vsub.f32 %v410, %v489
  %v566 = vsub.f32 %v411, %v490
  %v567 = vsub.f32 %v412, %v491
  %v568 = vsub.f32 %v413, %v492
  %v569 = vsub.f32 %v414, %v489
  %v570 = vsub.f32 %v415, %v490
  %v571 = vsub.f32 %v416, %v491
  %v572 = vsub.f32 %v417, %v492
  %v573 = vadd.f32 %v553, 1e-05
  %v574 = vadd.f32 %v554, 1e-05
  %v575 = vadd.f32 %v555, 1e-05
  %v576 = vadd.f32 %v556, 1e-05
  %v577 = vrsqrt.pop %v573
  %v578 = vmul.f32 %v577, %v573
  %v579 = vmul.f32 %v578, %v577
  %v580 = vmul.f32 0.5, %v579
  %v581 = vsub.f32 1.5, %v580
  %v582 = vmul.f32 %v577, %v581
  %vm583 = vweird.f32 %v573
  %vm584 = vweird.f32 %v577
  %vm585 = vmor %vm583, %vm584
  %v586 = vsel %vm585, %v577, %v582
  %v587 = vrsqrt.pop %v574
  %v588 = vmul.f32 %v587, %v574
  %v589 = vmul.f32 %v588, %v587
  %v590 = vmul.f32 0.5, %v589
  %v591 = vsub.f32 1.5, %v590
  %v592 = vmul.f32 %v587, %v591
  %vm593 = vweird.f32 %v574
  %vm594 = vweird.f32 %v587
  %vm595 = vmor %vm593, %vm594
  %v596 = vsel %vm595, %v587, %v592
  %v597 = vrsqrt.pop %v575
  %v598 = vmul.f32 %v597, %v575
  %v599 = vmul.f32 %v598, %v597
  %v600 = vmul.f32 0.5, %v599
  %v601 = vsub.f32 1.5, %v600
  %v602 = vmul.f32 %v597, %v601
  %vm603 = vweird.f32 %v575
  %vm604 = vweird.f32 %v597
  %vm605 = vmor %vm603, %vm604
  %v606 = vsel %vm605, %v597, %v602
  %v607 = vrsqrt.pop %v576
  %v608 = vmul.f32 %v607, %v576
  %v609 = vmul.f32 %v608, %v607
  %v610 = vmul.f32 0.5, %v609
  %v611 = vsub.f32 1.5, %v610
  %v612 = vmul.f32 %v607, %v611
  %vm613 = vweird.f32 %v576
  %vm614 = vweird.f32 %v607
  %vm615 = vmor %vm613, %vm614
  %v616 = vsel %vm615, %v607, %v612
  %v617 = vmul.f32 %v557, %v586
  %v618 = vmul.f32 %v558, %v596
  %v619 = vmul.f32 %v559, %v606
  %v620 = vmul.f32 %v560, %v616
  %v621 = vmul.f32 %v561, %v586
  %v622 = vmul.f32 %v562, %v596
  %v623 = vmul.f32 %v563, %v606
  %v624 = vmul.f32 %v564, %v616
  %v625 = vmul.f32 %v565, %v586
  %v626 = vmul.f32 %v566, %v596
  %v627 = vmul.f32 %v567, %v606
  %v628 = vmul.f32 %v568, %v616
  %v629 = vmul.f32 %v569, %v586
  %v630 = vmul.f32 %v570, %v596
  %v631 = vmul.f32 %v571, %v606
  %v632 = vmul.f32 %v572, %v616
  %634 = vset.pattern.permute.xlu0 0
  %635 = vperm.xlu0 %634, %v430
  %v636 = vpop.permute.xlu0 %635
  %639 = vset.pattern.permute.xlu0 0
  %640 = vperm.xlu0 %639, %v431
  %v641 = vpop.permute.xlu0 %640
  %644 = vset.pattern.permute.xlu0 0
  %645 = vperm.xlu0 %644, %v432
  %v646 = vpop.permute.xlu0 %645
  %649 = vset.pattern.permute.xlu0 0
  %650 = vperm.xlu0 %649, %v433
  %v651 = vpop.permute.xlu0 %650
  %v653 = vmul.f32 %v617, %v636
  %v654 = vmul.f32 %v618, %v636
  %v655 = vmul.f32 %v619, %v636
  %v656 = vmul.f32 %v620, %v636
  %v657 = vmul.f32 %v621, %v641
  %v658 = vmul.f32 %v622, %v641
  %v659 = vmul.f32 %v623, %v641
  %v660 = vmul.f32 %v624, %v641
  %v661 = vmul.f32 %v625, %v646
  %v662 = vmul.f32 %v626, %v646
  %v663 = vmul.f32 %v627, %v646
  %v664 = vmul.f32 %v628, %v646
  %v665 = vmul.f32 %v629, %v651
  %v666 = vmul.f32 %v630, %v651
  %v667 = vmul.f32 %v631, %v651
  %v668 = vmul.f32 %v632, %v651
  %670 = vset.pattern.permute.xlu0 0
  %671 = vperm.xlu0 %670, %v434
  %v672 = vpop.permute.xlu0 %671
  %675 = vset.pattern.permute.xlu0 0
  %676 = vperm.xlu0 %675, %v435
  %v677 = vpop.permute.xlu0 %676
  %680 = vset.pattern.permute.xlu0 0
  %681 = vperm.xlu0 %680, %v436
  %v682 = vpop.permute.xlu0 %681
  %685 = vset.pattern.permute.xlu0 0
  %686 = vperm.xlu0 %685, %v437
  %v687 = vpop.permute.xlu0 %686
  %v689 = vadd.f32 %v653, %v672
  %v690 = vadd.f32 %v654, %v672
  %v691 = vadd.f32 %v655, %v672
  %v692 = vadd.f32 %v656, %v672
  %v693 = vadd.f32 %v657, %v677
  %v694 = vadd.f32 %v658, %v677
  %v695 = vadd.f32 %v659, %v677
  %v696 = vadd.f32 %v660, %v677
  %v697 = vadd.f32 %v661, %v682
  %v698 = vadd.f32 %v662, %v682
  %v699 = vadd.f32 %v663, %v682
  %v700 = vadd.f32 %v664, %v682
  %v701 = vadd.f32 %v665, %v687
  %v702 = vadd.f32 %v666, %v687
  %v703 = vadd.f32 %v667, %v687
  %v704 = vadd.f32 %v668, %v687
  %v705 = vld [vmem:[%s2] sm:$0xff]
  %v706 = vld [vmem:[%s2 + $0x8] sm:$0xff]
  %v707 = vld [vmem:[%s2 + $0x10] sm:$0xff]
  %v708 = vld [vmem:[%s2 + $0x18] sm:$0xff]
  %v709 = vld [vmem:[%s2 + $0x20] sm:$0xff]
  %v710 = vld [vmem:[%s2 + $0x28] sm:$0xff]
  %v711 = vld [vmem:[%s2 + $0x30] sm:$0xff]
  %v712 = vld [vmem:[%s2 + $0x38] sm:$0xff]
  %714 = vset.pattern.permute.xlu0 0
  %715 = vperm.xlu0 %714, %v418
  %v716 = vpop.permute.xlu0 %715
  %719 = vset.pattern.permute.xlu0 0
  %720 = vperm.xlu0 %719, %v419
  %v721 = vpop.permute.xlu0 %720
  %724 = vset.pattern.permute.xlu0 0
  %725 = vperm.xlu0 %724, %v420
  %v726 = vpop.permute.xlu0 %725
  %729 = vset.pattern.permute.xlu0 0
  %730 = vperm.xlu0 %729, %v421
  %v731 = vpop.permute.xlu0 %730
  %734 = vset.pattern.permute.xlu0 0
  %735 = vperm.xlu0 %734, %v422
  %v736 = vpop.permute.xlu0 %735
  %739 = vset.pattern.permute.xlu0 0
  %740 = vperm.xlu0 %739, %v423
  %v741 = vpop.permute.xlu0 %740
  %744 = vset.pattern.permute.xlu0 0
  %745 = vperm.xlu0 %744, %v424
  %v746 = vpop.permute.xlu0 %745
  %749 = vset.pattern.permute.xlu0 0
  %750 = vperm.xlu0 %749, %v425
  %v751 = vpop.permute.xlu0 %750
  %vm753 = vcmask 261120
  %v755 = vsel %vm753, %v705, 0
  %v758 = vsel %vm753, %v706, 0
  %v761 = vsel %vm753, %v707, 0
  %v764 = vsel %vm753, %v708, 0
  %v767 = vsel %vm753, %v709, 0
  %v770 = vsel %vm753, %v710, 0
  %v773 = vsel %vm753, %v711, 0
  %v776 = vsel %vm753, %v712, 0
  %778 = vmatpush.msra.mxu0 0.0
  %779 = vmatpush.msra.mxu0 0.0
  %780 = vmatpush.msra.mxu0 0.0
  %781 = vmatpush.msra.mxu0 0.0
  %782 = vmatpush.msra.mxu0 0.0
  %783 = vmatpush.msra.mxu0 0.0
  %784 = vmatpush.msra.mxu0 0.0
  %785 = vmatpush.msra.mxu0 0.0
  %786 = vmatpush.msra.mxu0 0.0
  %787 = vmatpush.msra.mxu0 0.0
  %788 = vmatpush.msra.mxu0 0.0
  %789 = vmatpush.msra.mxu0 0.0
  %790 = vmatpush.msra.mxu0 %v701
  %791 = vmatpush.msra.mxu0 %v697
  %792 = vmatpush.msra.mxu0 %v693
  %793 = vmatpush.msra.mxu0 %v689
  %794 = vmatmul.f32.gmra.mxu0 %v755
  %v795 = vpop.f32.mrf.mxu0
  %v796 = vadd.f32 %v716, %v795
  %797 = vmatmul.f32.gmra.mxu0 %v758
  %v798 = vpop.f32.mrf.mxu0
  %v799 = vadd.f32 %v721, %v798
  %800 = vmatmul.f32.gmra.mxu0 %v761
  %v801 = vpop.f32.mrf.mxu0
  %v802 = vadd.f32 %v726, %v801
  %803 = vmatmul.f32.gmra.mxu0 %v764
  %v804 = vpop.f32.mrf.mxu0
  %v805 = vadd.f32 %v731, %v804
  %806 = vmatmul.f32.gmra.mxu0 %v767
  %v807 = vpop.f32.mrf.mxu0
  %v808 = vadd.f32 %v736, %v807
  %809 = vmatmul.f32.gmra.mxu0 %v770
  %v810 = vpop.f32.mrf.mxu0
  %v811 = vadd.f32 %v741, %v810
  %812 = vmatmul.f32.gmra.mxu0 %v773
  %v813 = vpop.f32.mrf.mxu0
  %v814 = vadd.f32 %v746, %v813
  %815 = vmatmul.f32.gmra.mxu0 %v776
  %v816 = vpop.f32.mrf.mxu0
  %v817 = vadd.f32 %v751, %v816
  %818 = vdwg.mxu0
  %819 = vmatpush.msra.mxu0 0.0
  %820 = vmatpush.msra.mxu0 0.0
  %821 = vmatpush.msra.mxu0 0.0
  %822 = vmatpush.msra.mxu0 0.0
  %823 = vmatpush.msra.mxu0 0.0
  %824 = vmatpush.msra.mxu0 0.0
  %825 = vmatpush.msra.mxu0 0.0
  %826 = vmatpush.msra.mxu0 0.0
  %827 = vmatpush.msra.mxu0 0.0
  %828 = vmatpush.msra.mxu0 0.0
  %829 = vmatpush.msra.mxu0 0.0
  %830 = vmatpush.msra.mxu0 0.0
  %831 = vmatpush.msra.mxu0 %v702
  %832 = vmatpush.msra.mxu0 %v698
  %833 = vmatpush.msra.mxu0 %v694
  %834 = vmatpush.msra.mxu0 %v690
  %835 = vmatmul.f32.gmra.mxu0 %v755
  %v836 = vpop.f32.mrf.mxu0
  %v837 = vadd.f32 %v716, %v836
  %838 = vmatmul.f32.gmra.mxu0 %v758
  %v839 = vpop.f32.mrf.mxu0
  %v840 = vadd.f32 %v721, %v839
  %841 = vmatmul.f32.gmra.mxu0 %v761
  %v842 = vpop.f32.mrf.mxu0
  %v843 = vadd.f32 %v726, %v842
  %844 = vmatmul.f32.gmra.mxu0 %v764
  %v845 = vpop.f32.mrf.mxu0
  %v846 = vadd.f32 %v731, %v845
  %847 = vmatmul.f32.gmra.mxu0 %v767
  %v848 = vpop.f32.mrf.mxu0
  %v849 = vadd.f32 %v736, %v848
  %850 = vmatmul.f32.gmra.mxu0 %v770
  %v851 = vpop.f32.mrf.mxu0
  %v852 = vadd.f32 %v741, %v851
  %853 = vmatmul.f32.gmra.mxu0 %v773
  %v854 = vpop.f32.mrf.mxu0
  %v855 = vadd.f32 %v746, %v854
  %856 = vmatmul.f32.gmra.mxu0 %v776
  %v857 = vpop.f32.mrf.mxu0
  %v858 = vadd.f32 %v751, %v857
  %859 = vdwg.mxu0
  %860 = vmatpush.msra.mxu0 0.0
  %861 = vmatpush.msra.mxu0 0.0
  %862 = vmatpush.msra.mxu0 0.0
  %863 = vmatpush.msra.mxu0 0.0
  %864 = vmatpush.msra.mxu0 0.0
  %865 = vmatpush.msra.mxu0 0.0
  %866 = vmatpush.msra.mxu0 0.0
  %867 = vmatpush.msra.mxu0 0.0
  %868 = vmatpush.msra.mxu0 0.0
  %869 = vmatpush.msra.mxu0 0.0
  %870 = vmatpush.msra.mxu0 0.0
  %871 = vmatpush.msra.mxu0 0.0
  %872 = vmatpush.msra.mxu0 %v703
  %873 = vmatpush.msra.mxu0 %v699
  %874 = vmatpush.msra.mxu0 %v695
  %875 = vmatpush.msra.mxu0 %v691
  %876 = vmatmul.f32.gmra.mxu0 %v755
  %v877 = vpop.f32.mrf.mxu0
  %v878 = vadd.f32 %v716, %v877
  %879 = vmatmul.f32.gmra.mxu0 %v758
  %v880 = vpop.f32.mrf.mxu0
  %v881 = vadd.f32 %v721, %v880
  %882 = vmatmul.f32.gmra.mxu0 %v761
  %v883 = vpop.f32.mrf.mxu0
  %v884 = vadd.f32 %v726, %v883
  %885 = vmatmul.f32.gmra.mxu0 %v764
  %v886 = vpop.f32.mrf.mxu0
  %v887 = vadd.f32 %v731, %v886
  %888 = vmatmul.f32.gmra.mxu0 %v767
  %v889 = vpop.f32.mrf.mxu0
  %v890 = vadd.f32 %v736, %v889
  %891 = vmatmul.f32.gmra.mxu0 %v770
  %v892 = vpop.f32.mrf.mxu0
  %v893 = vadd.f32 %v741, %v892
  %894 = vmatmul.f32.gmra.mxu0 %v773
  %v895 = vpop.f32.mrf.mxu0
  %v896 = vadd.f32 %v746, %v895
  %897 = vmatmul.f32.gmra.mxu0 %v776
  %v898 = vpop.f32.mrf.mxu0
  %v899 = vadd.f32 %v751, %v898
  %900 = vdwg.mxu0
  %901 = vmatpush.msra.mxu0 0.0
  %902 = vmatpush.msra.mxu0 0.0
  %903 = vmatpush.msra.mxu0 0.0
  %904 = vmatpush.msra.mxu0 0.0
  %905 = vmatpush.msra.mxu0 0.0
  %906 = vmatpush.msra.mxu0 0.0
  %907 = vmatpush.msra.mxu0 0.0
  %908 = vmatpush.msra.mxu0 0.0
  %909 = vmatpush.msra.mxu0 0.0
  %910 = vmatpush.msra.mxu0 0.0
  %911 = vmatpush.msra.mxu0 0.0
  %912 = vmatpush.msra.mxu0 0.0
  %913 = vmatpush.msra.mxu0 %v704
  %914 = vmatpush.msra.mxu0 %v700
  %915 = vmatpush.msra.mxu0 %v696
  %916 = vmatpush.msra.mxu0 %v692
  %917 = vmatmul.f32.gmra.mxu0 %v755
  %v918 = vpop.f32.mrf.mxu0
  %v919 = vadd.f32 %v716, %v918
  %920 = vmatmul.f32.gmra.mxu0 %v758
  %v921 = vpop.f32.mrf.mxu0
  %v922 = vadd.f32 %v721, %v921
  %923 = vmatmul.f32.gmra.mxu0 %v761
  %v924 = vpop.f32.mrf.mxu0
  %v925 = vadd.f32 %v726, %v924
  %926 = vmatmul.f32.gmra.mxu0 %v764
  %v927 = vpop.f32.mrf.mxu0
  %v928 = vadd.f32 %v731, %v927
  %929 = vmatmul.f32.gmra.mxu0 %v767
  %v930 = vpop.f32.mrf.mxu0
  %v931 = vadd.f32 %v736, %v930
  %932 = vmatmul.f32.gmra.mxu0 %v770
  %v933 = vpop.f32.mrf.mxu0
  %v934 = vadd.f32 %v741, %v933
  %935 = vmatmul.f32.gmra.mxu0 %v773
  %v936 = vpop.f32.mrf.mxu0
  %v937 = vadd.f32 %v746, %v936
  %938 = vmatmul.f32.gmra.mxu0 %v776
  %v939 = vpop.f32.mrf.mxu0
  %v940 = vadd.f32 %v751, %v939
  %941 = vdwg.mxu0
  %v942 = vmax.f32 %v796, 0.0
  %v943 = vmax.f32 %v837, 0.0
  %v944 = vmax.f32 %v878, 0.0
  %v945 = vmax.f32 %v919, 0.0
  %v946 = vmax.f32 %v799, 0.0
  %v947 = vmax.f32 %v840, 0.0
  %v948 = vmax.f32 %v881, 0.0
  %v949 = vmax.f32 %v922, 0.0
  %v950 = vmax.f32 %v802, 0.0
  %v951 = vmax.f32 %v843, 0.0
  %v952 = vmax.f32 %v884, 0.0
  %v953 = vmax.f32 %v925, 0.0
  %v954 = vmax.f32 %v805, 0.0
  %v955 = vmax.f32 %v846, 0.0
  %v956 = vmax.f32 %v887, 0.0
  %v957 = vmax.f32 %v928, 0.0
  %v958 = vmax.f32 %v808, 0.0
  %v959 = vmax.f32 %v849, 0.0
  %v960 = vmax.f32 %v890, 0.0
  %v961 = vmax.f32 %v931, 0.0
  %v962 = vmax.f32 %v811, 0.0
  %v963 = vmax.f32 %v852, 0.0
  %v964 = vmax.f32 %v893, 0.0
  %v965 = vmax.f32 %v934, 0.0
  %v966 = vmax.f32 %v814, 0.0
  %v967 = vmax.f32 %v855, 0.0
  %v968 = vmax.f32 %v896, 0.0
  %v969 = vmax.f32 %v937, 0.0
  %v970 = vmax.f32 %v817, 0.0
  %v971 = vmax.f32 %v858, 0.0
  %v972 = vmax.f32 %v899, 0.0
  %v973 = vmax.f32 %v940, 0.0
  %v974 = vld [vmem:[%s3] sm:$0xff]
  %v975 = vld [vmem:[%s3 + $0x8] sm:$0xff]
  %v976 = vld [vmem:[%s3 + $0x10] sm:$0xff]
  %v977 = vld [vmem:[%s3 + $0x18] sm:$0xff]
  %979 = vset.pattern.permute.xlu0 0
  %980 = vperm.xlu0 %979, %v426
  %v981 = vpop.permute.xlu0 %980
  %984 = vset.pattern.permute.xlu0 0
  %985 = vperm.xlu0 %984, %v427
  %v986 = vpop.permute.xlu0 %985
  %989 = vset.pattern.permute.xlu0 0
  %990 = vperm.xlu0 %989, %v428
  %v991 = vpop.permute.xlu0 %990
  %994 = vset.pattern.permute.xlu0 0
  %995 = vperm.xlu0 %994, %v429
  %v996 = vpop.permute.xlu0 %995
  %vm998 = vcmask 523264
  %v1000 = vsel %vm998, %v974, 0
  %v1003 = vsel %vm998, %v975, 0
  %v1006 = vsel %vm998, %v976, 0
  %v1009 = vsel %vm998, %v977, 0
  %1011 = vmatpush.msra.mxu0 0.0
  %1012 = vmatpush.msra.mxu0 0.0
  %1013 = vmatpush.msra.mxu0 0.0
  %1014 = vmatpush.msra.mxu0 0.0
  %1015 = vmatpush.msra.mxu0 0.0
  %1016 = vmatpush.msra.mxu0 0.0
  %1017 = vmatpush.msra.mxu0 0.0
  %1018 = vmatpush.msra.mxu0 0.0
  %1019 = vmatpush.msra.mxu0 %v970
  %1020 = vmatpush.msra.mxu0 %v966
  %1021 = vmatpush.msra.mxu0 %v962
  %1022 = vmatpush.msra.mxu0 %v958
  %1023 = vmatpush.msra.mxu0 %v954
  %1024 = vmatpush.msra.mxu0 %v950
  %1025 = vmatpush.msra.mxu0 %v946
  %1026 = vmatpush.msra.mxu0 %v942
  %1027 = vmatmul.f32.gmra.mxu0 %v1000
  %v1028 = vpop.f32.mrf.mxu0
  %v1029 = vadd.f32 %v981, %v1028
  %1030 = vmatmul.f32.gmra.mxu0 %v1003
  %v1031 = vpop.f32.mrf.mxu0
  %v1032 = vadd.f32 %v986, %v1031
  %1033 = vmatmul.f32.gmra.mxu0 %v1006
  %v1034 = vpop.f32.mrf.mxu0
  %v1035 = vadd.f32 %v991, %v1034
  %1036 = vmatmul.f32.gmra.mxu0 %v1009
  %v1037 = vpop.f32.mrf.mxu0
  %v1038 = vadd.f32 %v996, %v1037
  %1039 = vdwg.mxu0
  %1040 = vmatpush.msra.mxu0 0.0
  %1041 = vmatpush.msra.mxu0 0.0
  %1042 = vmatpush.msra.mxu0 0.0
  %1043 = vmatpush.msra.mxu0 0.0
  %1044 = vmatpush.msra.mxu0 0.0
  %1045 = vmatpush.msra.mxu0 0.0
  %1046 = vmatpush.msra.mxu0 0.0
  %1047 = vmatpush.msra.mxu0 0.0
  %1048 = vmatpush.msra.mxu0 %v971
  %1049 = vmatpush.msra.mxu0 %v967
  %1050 = vmatpush.msra.mxu0 %v963
  %1051 = vmatpush.msra.mxu0 %v959
  %1052 = vmatpush.msra.mxu0 %v955
  %1053 = vmatpush.msra.mxu0 %v951
  %1054 = vmatpush.msra.mxu0 %v947
  %1055 = vmatpush.msra.mxu0 %v943
  %1056 = vmatmul.f32.gmra.mxu0 %v1000
  %v1057 = vpop.f32.mrf.mxu0
  %v1058 = vadd.f32 %v981, %v1057
  %1059 = vmatmul.f32.gmra.mxu0 %v1003
  %v1060 = vpop.f32.mrf.mxu0
  %v1061 = vadd.f32 %v986, %v1060
  %1062 = vmatmul.f32.gmra.mxu0 %v1006
  %v1063 = vpop.f32.mrf.mxu0
  %v1064 = vadd.f32 %v991, %v1063
  %1065 = vmatmul.f32.gmra.mxu0 %v1009
  %v1066 = vpop.f32.mrf.mxu0
  %v1067 = vadd.f32 %v996, %v1066
  %1068 = vdwg.mxu0
  %1069 = vmatpush.msra.mxu0 0.0
  %1070 = vmatpush.msra.mxu0 0.0
  %1071 = vmatpush.msra.mxu0 0.0
  %1072 = vmatpush.msra.mxu0 0.0
  %1073 = vmatpush.msra.mxu0 0.0
  %1074 = vmatpush.msra.mxu0 0.0
  %1075 = vmatpush.msra.mxu0 0.0
  %1076 = vmatpush.msra.mxu0 0.0
  %1077 = vmatpush.msra.mxu0 %v972
  %1078 = vmatpush.msra.mxu0 %v968
  %1079 = vmatpush.msra.mxu0 %v964
  %1080 = vmatpush.msra.mxu0 %v960
  %1081 = vmatpush.msra.mxu0 %v956
  %1082 = vmatpush.msra.mxu0 %v952
  %1083 = vmatpush.msra.mxu0 %v948
  %1084 = vmatpush.msra.mxu0 %v944
  %1085 = vmatmul.f32.gmra.mxu0 %v1000
  %v1086 = vpop.f32.mrf.mxu0
  %v1087 = vadd.f32 %v981, %v1086
  %1088 = vmatmul.f32.gmra.mxu0 %v1003
  %v1089 = vpop.f32.mrf.mxu0
  %v1090 = vadd.f32 %v986, %v1089
  %1091 = vmatmul.f32.gmra.mxu0 %v1006
  %v1092 = vpop.f32.mrf.mxu0
  %v1093 = vadd.f32 %v991, %v1092
  %1094 = vmatmul.f32.gmra.mxu0 %v1009
  %v1095 = vpop.f32.mrf.mxu0
  %v1096 = vadd.f32 %v996, %v1095
  %1097 = vdwg.mxu0
  %1098 = vmatpush.msra.mxu0 0.0
  %1099 = vmatpush.msra.mxu0 0.0
  %1100 = vmatpush.msra.mxu0 0.0
  %1101 = vmatpush.msra.mxu0 0.0
  %1102 = vmatpush.msra.mxu0 0.0
  %1103 = vmatpush.msra.mxu0 0.0
  %1104 = vmatpush.msra.mxu0 0.0
  %1105 = vmatpush.msra.mxu0 0.0
  %1106 = vmatpush.msra.mxu0 %v973
  %1107 = vmatpush.msra.mxu0 %v969
  %1108 = vmatpush.msra.mxu0 %v965
  %1109 = vmatpush.msra.mxu0 %v961
  %1110 = vmatpush.msra.mxu0 %v957
  %1111 = vmatpush.msra.mxu0 %v953
  %1112 = vmatpush.msra.mxu0 %v949
  %1113 = vmatpush.msra.mxu0 %v945
  %1114 = vmatmul.f32.gmra.mxu0 %v1000
  %v1115 = vpop.f32.mrf.mxu0
  %v1116 = vadd.f32 %v981, %v1115
  %1117 = vmatmul.f32.gmra.mxu0 %v1003
  %v1118 = vpop.f32.mrf.mxu0
  %v1119 = vadd.f32 %v986, %v1118
  %1120 = vmatmul.f32.gmra.mxu0 %v1006
  %v1121 = vpop.f32.mrf.mxu0
  %v1122 = vadd.f32 %v991, %v1121
  %1123 = vmatmul.f32.gmra.mxu0 %v1009
  %v1124 = vpop.f32.mrf.mxu0
  %v1125 = vadd.f32 %v996, %v1124
  %1126 = vdwg.mxu0
  %v1127 = vadd.f32 %v689, %v1029
  %v1128 = vadd.f32 %v690, %v1058
  %v1129 = vadd.f32 %v691, %v1087
  %v1130 = vadd.f32 %v692, %v1116
  %v1131 = vadd.f32 %v693, %v1032
  %v1132 = vadd.f32 %v694, %v1061
  %v1133 = vadd.f32 %v695, %v1090
  %v1134 = vadd.f32 %v696, %v1119
  %v1135 = vadd.f32 %v697, %v1035
  %v1136 = vadd.f32 %v698, %v1064
  %v1137 = vadd.f32 %v699, %v1093
  %v1138 = vadd.f32 %v700, %v1122
  %v1139 = vadd.f32 %v701, %v1038
  %v1140 = vadd.f32 %v702, %v1067
  %v1141 = vadd.f32 %v703, %v1096
  %v1142 = vadd.f32 %v704, %v1125
  %v1143 = vadd.f32 %v1127, %v1131
  %v1144 = vadd.f32 %v1143, %v1135
  %v1145 = vadd.f32 %v1144, %v1139
  %v1146 = vrot.slane %v1145, 4
  %v1147 = vadd.f32 %v1145, %v1146
  %v1148 = vrot.slane %v1147, 2
  %v1149 = vadd.f32 %v1147, %v1148
  %v1150 = vrot.slane %v1149, 1
  %v1151 = vadd.f32 %v1149, %v1150
  %v1152 = vadd.f32 %v1128, %v1132
  %v1153 = vadd.f32 %v1152, %v1136
  %v1154 = vadd.f32 %v1153, %v1140
  %v1155 = vrot.slane %v1154, 4
  %v1156 = vadd.f32 %v1154, %v1155
  %v1157 = vrot.slane %v1156, 2
  %v1158 = vadd.f32 %v1156, %v1157
  %v1159 = vrot.slane %v1158, 1
  %v1160 = vadd.f32 %v1158, %v1159
  %v1161 = vadd.f32 %v1129, %v1133
  %v1162 = vadd.f32 %v1161, %v1137
  %v1163 = vadd.f32 %v1162, %v1141
  %v1164 = vrot.slane %v1163, 4
  %v1165 = vadd.f32 %v1163, %v1164
  %v1166 = vrot.slane %v1165, 2
  %v1167 = vadd.f32 %v1165, %v1166
  %v1168 = vrot.slane %v1167, 1
  %v1169 = vadd.f32 %v1167, %v1168
  %v1170 = vadd.f32 %v1130, %v1134
  %v1171 = vadd.f32 %v1170, %v1138
  %v1172 = vadd.f32 %v1171, %v1142
  %v1173 = vrot.slane %v1172, 4
  %v1174 = vadd.f32 %v1172, %v1173
  %v1175 = vrot.slane %v1174, 2
  %v1176 = vadd.f32 %v1174, %v1175
  %v1177 = vrot.slane %v1176, 1
  %v1178 = vadd.f32 %v1176, %v1177
  %v1179 = vmul.f32 %v1151, %v488
  %v1180 = vmul.f32 %v1160, %v488
  %v1181 = vmul.f32 %v1169, %v488
  %v1182 = vmul.f32 %v1178, %v488
  %v1183 = vmul.f32 %v1127, %v1127
  %v1184 = vmul.f32 %v1128, %v1128
  %v1185 = vmul.f32 %v1129, %v1129
  %v1186 = vmul.f32 %v1130, %v1130
  %v1187 = vmul.f32 %v1131, %v1131
  %v1188 = vmul.f32 %v1132, %v1132
  %v1189 = vmul.f32 %v1133, %v1133
  %v1190 = vmul.f32 %v1134, %v1134
  %v1191 = vmul.f32 %v1135, %v1135
  %v1192 = vmul.f32 %v1136, %v1136
  %v1193 = vmul.f32 %v1137, %v1137
  %v1194 = vmul.f32 %v1138, %v1138
  %v1195 = vmul.f32 %v1139, %v1139
  %v1196 = vmul.f32 %v1140, %v1140
  %v1197 = vmul.f32 %v1141, %v1141
  %v1198 = vmul.f32 %v1142, %v1142
  %v1199 = vadd.f32 %v1183, %v1187
  %v1200 = vadd.f32 %v1199, %v1191
  %v1201 = vadd.f32 %v1200, %v1195
  %v1202 = vrot.slane %v1201, 4
  %v1203 = vadd.f32 %v1201, %v1202
  %v1204 = vrot.slane %v1203, 2
  %v1205 = vadd.f32 %v1203, %v1204
  %v1206 = vrot.slane %v1205, 1
  %v1207 = vadd.f32 %v1205, %v1206
  %v1208 = vadd.f32 %v1184, %v1188
  %v1209 = vadd.f32 %v1208, %v1192
  %v1210 = vadd.f32 %v1209, %v1196
  %v1211 = vrot.slane %v1210, 4
  %v1212 = vadd.f32 %v1210, %v1211
  %v1213 = vrot.slane %v1212, 2
  %v1214 = vadd.f32 %v1212, %v1213
  %v1215 = vrot.slane %v1214, 1
  %v1216 = vadd.f32 %v1214, %v1215
  %v1217 = vadd.f32 %v1185, %v1189
  %v1218 = vadd.f32 %v1217, %v1193
  %v1219 = vadd.f32 %v1218, %v1197
  %v1220 = vrot.slane %v1219, 4
  %v1221 = vadd.f32 %v1219, %v1220
  %v1222 = vrot.slane %v1221, 2
  %v1223 = vadd.f32 %v1221, %v1222
  %v1224 = vrot.slane %v1223, 1
  %v1225 = vadd.f32 %v1223, %v1224
  %v1226 = vadd.f32 %v1186, %v1190
  %v1227 = vadd.f32 %v1226, %v1194
  %v1228 = vadd.f32 %v1227, %v1198
  %v1229 = vrot.slane %v1228, 4
  %v1230 = vadd.f32 %v1228, %v1229
  %v1231 = vrot.slane %v1230, 2
  %v1232 = vadd.f32 %v1230, %v1231
  %v1233 = vrot.slane %v1232, 1
  %v1234 = vadd.f32 %v1232, %v1233
  %v1235 = vmul.f32 %v1207, %v488
  %v1236 = vmul.f32 %v1216, %v488
  %v1237 = vmul.f32 %v1225, %v488
  %v1238 = vmul.f32 %v1234, %v488
  %v1239 = vmul.f32 %v1179, %v1179
  %v1240 = vmul.f32 %v1180, %v1180
  %v1241 = vmul.f32 %v1181, %v1181
  %v1242 = vmul.f32 %v1182, %v1182
  %v1243 = vsub.f32 %v1235, %v1239
  %v1244 = vsub.f32 %v1236, %v1240
  %v1245 = vsub.f32 %v1237, %v1241
  %v1246 = vsub.f32 %v1238, %v1242
  %v1247 = vsub.f32 %v1127, %v1179
  %v1248 = vsub.f32 %v1128, %v1180
  %v1249 = vsub.f32 %v1129, %v1181
  %v1250 = vsub.f32 %v1130, %v1182
  %v1251 = vsub.f32 %v1131, %v1179
  %v1252 = vsub.f32 %v1132, %v1180
  %v1253 = vsub.f32 %v1133, %v1181
  %v1254 = vsub.f32 %v1134, %v1182
  %v1255 = vsub.f32 %v1135, %v1179
  %v1256 = vsub.f32 %v1136, %v1180
  %v1257 = vsub.f32 %v1137, %v1181
  %v1258 = vsub.f32 %v1138, %v1182
  %v1259 = vsub.f32 %v1139, %v1179
  %v1260 = vsub.f32 %v1140, %v1180
  %v1261 = vsub.f32 %v1141, %v1181
  %v1262 = vsub.f32 %v1142, %v1182
  %v1263 = vadd.f32 %v1243, 1e-05
  %v1264 = vadd.f32 %v1244, 1e-05
  %v1265 = vadd.f32 %v1245, 1e-05
  %v1266 = vadd.f32 %v1246, 1e-05
  %v1267 = vrsqrt.pop %v1263
  %v1268 = vmul.f32 %v1267, %v1263
  %v1269 = vmul.f32 %v1268, %v1267
  %v1270 = vmul.f32 0.5, %v1269
  %v1271 = vsub.f32 1.5, %v1270
  %v1272 = vmul.f32 %v1267, %v1271
  %vm1273 = vweird.f32 %v1263
  %vm1274 = vweird.f32 %v1267
  %vm1275 = vmor %vm1273, %vm1274
  %v1276 = vsel %vm1275, %v1267, %v1272
  %v1277 = vrsqrt.pop %v1264
  %v1278 = vmul.f32 %v1277, %v1264
  %v1279 = vmul.f32 %v1278, %v1277
  %v1280 = vmul.f32 0.5, %v1279
  %v1281 = vsub.f32 1.5, %v1280
  %v1282 = vmul.f32 %v1277, %v1281
  %vm1283 = vweird.f32 %v1264
  %vm1284 = vweird.f32 %v1277
  %vm1285 = vmor %vm1283, %vm1284
  %v1286 = vsel %vm1285, %v1277, %v1282
  %v1287 = vrsqrt.pop %v1265
  %v1288 = vmul.f32 %v1287, %v1265
  %v1289 = vmul.f32 %v1288, %v1287
  %v1290 = vmul.f32 0.5, %v1289
  %v1291 = vsub.f32 1.5, %v1290
  %v1292 = vmul.f32 %v1287, %v1291
  %vm1293 = vweird.f32 %v1265
  %vm1294 = vweird.f32 %v1287
  %vm1295 = vmor %vm1293, %vm1294
  %v1296 = vsel %vm1295, %v1287, %v1292
  %v1297 = vrsqrt.pop %v1266
  %v1298 = vmul.f32 %v1297, %v1266
  %v1299 = vmul.f32 %v1298, %v1297
  %v1300 = vmul.f32 0.5, %v1299
  %v1301 = vsub.f32 1.5, %v1300
  %v1302 = vmul.f32 %v1297, %v1301
  %vm1303 = vweird.f32 %v1266
  %vm1304 = vweird.f32 %v1297
  %vm1305 = vmor %vm1303, %vm1304
  %v1306 = vsel %vm1305, %v1297, %v1302
  %v1307 = vmul.f32 %v1247, %v1276
  %v1308 = vmul.f32 %v1248, %v1286
  %v1309 = vmul.f32 %v1249, %v1296
  %v1310 = vmul.f32 %v1250, %v1306
  %v1311 = vmul.f32 %v1251, %v1276
  %v1312 = vmul.f32 %v1252, %v1286
  %v1313 = vmul.f32 %v1253, %v1296
  %v1314 = vmul.f32 %v1254, %v1306
  %v1315 = vmul.f32 %v1255, %v1276
  %v1316 = vmul.f32 %v1256, %v1286
  %v1317 = vmul.f32 %v1257, %v1296
  %v1318 = vmul.f32 %v1258, %v1306
  %v1319 = vmul.f32 %v1259, %v1276
  %v1320 = vmul.f32 %v1260, %v1286
  %v1321 = vmul.f32 %v1261, %v1296
  %v1322 = vmul.f32 %v1262, %v1306
  %1324 = vset.pattern.permute.xlu0 0
  %1325 = vperm.xlu0 %1324, %v438
  %v1326 = vpop.permute.xlu0 %1325
  %1329 = vset.pattern.permute.xlu0 0
  %1330 = vperm.xlu0 %1329, %v439
  %v1331 = vpop.permute.xlu0 %1330
  %1334 = vset.pattern.permute.xlu0 0
  %1335 = vperm.xlu0 %1334, %v440
  %v1336 = vpop.permute.xlu0 %1335
  %1339 = vset.pattern.permute.xlu0 0
  %1340 = vperm.xlu0 %1339, %v441
  %v1341 = vpop.permute.xlu0 %1340
  %v1343 = vmul.f32 %v1307, %v1326
  %v1344 = vmul.f32 %v1308, %v1326
  %v1345 = vmul.f32 %v1309, %v1326
  %v1346 = vmul.f32 %v1310, %v1326
  %v1347 = vmul.f32 %v1311, %v1331
  %v1348 = vmul.f32 %v1312, %v1331
  %v1349 = vmul.f32 %v1313, %v1331
  %v1350 = vmul.f32 %v1314, %v1331
  %v1351 = vmul.f32 %v1315, %v1336
  %v1352 = vmul.f32 %v1316, %v1336
  %v1353 = vmul.f32 %v1317, %v1336
  %v1354 = vmul.f32 %v1318, %v1336
  %v1355 = vmul.f32 %v1319, %v1341
  %v1356 = vmul.f32 %v1320, %v1341
  %v1357 = vmul.f32 %v1321, %v1341
  %v1358 = vmul.f32 %v1322, %v1341
  %1360 = vset.pattern.permute.xlu0 0
  %1361 = vperm.xlu0 %1360, %v442
  %v1362 = vpop.permute.xlu0 %1361
  %1365 = vset.pattern.permute.xlu0 0
  %1366 = vperm.xlu0 %1365, %v443
  %v1367 = vpop.permute.xlu0 %1366
  %1370 = vset.pattern.permute.xlu0 0
  %1371 = vperm.xlu0 %1370, %v444
  %v1372 = vpop.permute.xlu0 %1371
  %1375 = vset.pattern.permute.xlu0 0
  %1376 = vperm.xlu0 %1375, %v445
  %v1377 = vpop.permute.xlu0 %1376
  %v1379 = vadd.f32 %v1343, %v1362
  %v1380 = vadd.f32 %v1344, %v1362
  %v1381 = vadd.f32 %v1345, %v1362
  %v1382 = vadd.f32 %v1346, %v1362
  %v1383 = vadd.f32 %v1347, %v1367
  %v1384 = vadd.f32 %v1348, %v1367
  %v1385 = vadd.f32 %v1349, %v1367
  %v1386 = vadd.f32 %v1350, %v1367
  %v1387 = vadd.f32 %v1351, %v1372
  %v1388 = vadd.f32 %v1352, %v1372
  %v1389 = vadd.f32 %v1353, %v1372
  %v1390 = vadd.f32 %v1354, %v1372
  %v1391 = vadd.f32 %v1355, %v1377
  %v1392 = vadd.f32 %v1356, %v1377
  %v1393 = vadd.f32 %v1357, %v1377
  %v1394 = vadd.f32 %v1358, %v1377
  %1395 = vrot.lane.b32.xlu0 %v1379, 16
  %v1396 = vpop.permute.xlu0 %1395
  %1397 = vrot.lane.b32.xlu0 %v1383, 16
  %v1398 = vpop.permute.xlu0 %1397
  %1399 = vrot.lane.b32.xlu0 %v1387, 16
  %v1400 = vpop.permute.xlu0 %1399
  %1401 = vrot.lane.b32.xlu0 %v1391, 16
  %v1402 = vpop.permute.xlu0 %1401
  %1403 = vrot.lane.b32.xlu0 %v1380, 16
  %v1404 = vpop.permute.xlu0 %1403
  %1405 = vrot.lane.b32.xlu0 %v1384, 16
  %v1406 = vpop.permute.xlu0 %1405
  %1407 = vrot.lane.b32.xlu0 %v1388, 16
  %v1408 = vpop.permute.xlu0 %1407
  %1409 = vrot.lane.b32.xlu0 %v1392, 16
  %v1410 = vpop.permute.xlu0 %1409
  %1411 = vrot.lane.b32.xlu0 %v1381, 16
  %v1412 = vpop.permute.xlu0 %1411
  %1413 = vrot.lane.b32.xlu0 %v1385, 16
  %v1414 = vpop.permute.xlu0 %1413
  %1415 = vrot.lane.b32.xlu0 %v1389, 16
  %v1416 = vpop.permute.xlu0 %1415
  %1417 = vrot.lane.b32.xlu0 %v1393, 16
  %v1418 = vpop.permute.xlu0 %1417
  %1419 = vrot.lane.b32.xlu0 %v1382, 16
  %v1420 = vpop.permute.xlu0 %1419
  %1421 = vrot.lane.b32.xlu0 %v1386, 16
  %v1422 = vpop.permute.xlu0 %1421
  %1423 = vrot.lane.b32.xlu0 %v1390, 16
  %v1424 = vpop.permute.xlu0 %1423
  %1425 = vrot.lane.b32.xlu0 %v1394, 16
  %v1426 = vpop.permute.xlu0 %1425
  %v1427 = vsel %vm74, %v1412, %v1420
  %v1428 = vsel %vm74, %v1414, %v1422
  %v1429 = vsel %vm74, %v1416, %v1424
  %v1430 = vsel %vm74, %v1418, %v1426
  %v1431 = vsel %vm74, %v1404, %v1412
  %v1432 = vsel %vm74, %v1406, %v1414
  %v1433 = vsel %vm74, %v1408, %v1416
  %v1434 = vsel %vm74, %v1410, %v1418
  %v1435 = vsel %vm74, %v1396, %v1404
  %v1436 = vsel %vm74, %v1398, %v1406
  %v1437 = vsel %vm74, %v1400, %v1408
  %v1438 = vsel %vm74, %v1402, %v1410
  %v1439 = vsel %vm74, %v1420, %v1396
  %v1440 = vsel %vm74, %v1422, %v1398
  %v1441 = vsel %vm74, %v1424, %v1400
  %v1442 = vsel %vm74, %v1426, %v1402
  %v1443 = vmul.f32 %v91, %v1439
  %v1444 = vmul.f32 %v92, %v1435
  %v1445 = vmul.f32 %v93, %v1431
  %v1446 = vmul.f32 %v94, %v1427
  %v1447 = vmul.f32 %v91, %v1440
  %v1448 = vmul.f32 %v92, %v1436
  %v1449 = vmul.f32 %v93, %v1432
  %v1450 = vmul.f32 %v94, %v1428
  %v1451 = vmul.f32 %v91, %v1441
  %v1452 = vmul.f32 %v92, %v1437
  %v1453 = vmul.f32 %v93, %v1433
  %v1454 = vmul.f32 %v94, %v1429
  %v1455 = vmul.f32 %v91, %v1442
  %v1456 = vmul.f32 %v92, %v1438
  %v1457 = vmul.f32 %v93, %v1434
  %v1458 = vmul.f32 %v94, %v1430
  %v1459 = vadd.f32 %v1379, %v1443
  %v1460 = vadd.f32 %v1380, %v1444
  %v1461 = vadd.f32 %v1381, %v1445
  %v1462 = vadd.f32 %v1382, %v1446
  %v1463 = vadd.f32 %v1383, %v1447
  %v1464 = vadd.f32 %v1384, %v1448
  %v1465 = vadd.f32 %v1385, %v1449
  %v1466 = vadd.f32 %v1386, %v1450
  %v1467 = vadd.f32 %v1387, %v1451
  %v1468 = vadd.f32 %v1388, %v1452
  %v1469 = vadd.f32 %v1389, %v1453
  %v1470 = vadd.f32 %v1390, %v1454
  %v1471 = vadd.f32 %v1391, %v1455
  %v1472 = vadd.f32 %v1392, %v1456
  %v1473 = vadd.f32 %v1393, %v1457
  %v1474 = vadd.f32 %v1394, %v1458
  %1475 = vrot.lane.b32.xlu0 %v1379, 112
  %v1476 = vpop.permute.xlu0 %1475
  %1477 = vrot.lane.b32.xlu0 %v1383, 112
  %v1478 = vpop.permute.xlu0 %1477
  %1479 = vrot.lane.b32.xlu0 %v1387, 112
  %v1480 = vpop.permute.xlu0 %1479
  %1481 = vrot.lane.b32.xlu0 %v1391, 112
  %v1482 = vpop.permute.xlu0 %1481
  %1483 = vrot.lane.b32.xlu0 %v1380, 112
  %v1484 = vpop.permute.xlu0 %1483
  %1485 = vrot.lane.b32.xlu0 %v1384, 112
  %v1486 = vpop.permute.xlu0 %1485
  %1487 = vrot.lane.b32.xlu0 %v1388, 112
  %v1488 = vpop.permute.xlu0 %1487
  %1489 = vrot.lane.b32.xlu0 %v1392, 112
  %v1490 = vpop.permute.xlu0 %1489
  %1491 = vrot.lane.b32.xlu0 %v1381, 112
  %v1492 = vpop.permute.xlu0 %1491
  %1493 = vrot.lane.b32.xlu0 %v1385, 112
  %v1494 = vpop.permute.xlu0 %1493
  %1495 = vrot.lane.b32.xlu0 %v1389, 112
  %v1496 = vpop.permute.xlu0 %1495
  %1497 = vrot.lane.b32.xlu0 %v1393, 112
  %v1498 = vpop.permute.xlu0 %1497
  %1499 = vrot.lane.b32.xlu0 %v1382, 112
  %v1500 = vpop.permute.xlu0 %1499
  %1501 = vrot.lane.b32.xlu0 %v1386, 112
  %v1502 = vpop.permute.xlu0 %1501
  %1503 = vrot.lane.b32.xlu0 %v1390, 112
  %v1504 = vpop.permute.xlu0 %1503
  %1505 = vrot.lane.b32.xlu0 %v1394, 112
  %v1506 = vpop.permute.xlu0 %1505
  %v1507 = vsel %vm159, %v1492, %v1500
  %v1508 = vsel %vm159, %v1494, %v1502
  %v1509 = vsel %vm159, %v1496, %v1504
  %v1510 = vsel %vm159, %v1498, %v1506
  %v1511 = vsel %vm159, %v1484, %v1492
  %v1512 = vsel %vm159, %v1486, %v1494
  %v1513 = vsel %vm159, %v1488, %v1496
  %v1514 = vsel %vm159, %v1490, %v1498
  %v1515 = vsel %vm159, %v1476, %v1484
  %v1516 = vsel %vm159, %v1478, %v1486
  %v1517 = vsel %vm159, %v1480, %v1488
  %v1518 = vsel %vm159, %v1482, %v1490
  %v1519 = vsel %vm159, %v1500, %v1476
  %v1520 = vsel %vm159, %v1502, %v1478
  %v1521 = vsel %vm159, %v1504, %v1480
  %v1522 = vsel %vm159, %v1506, %v1482
  %v1523 = vmul.f32 %v176, %v1515
  %v1524 = vmul.f32 %v177, %v1511
  %v1525 = vmul.f32 %v178, %v1507
  %v1526 = vmul.f32 %v179, %v1519
  %v1527 = vmul.f32 %v176, %v1516
  %v1528 = vmul.f32 %v177, %v1512
  %v1529 = vmul.f32 %v178, %v1508
  %v1530 = vmul.f32 %v179, %v1520
  %v1531 = vmul.f32 %v176, %v1517
  %v1532 = vmul.f32 %v177, %v1513
  %v1533 = vmul.f32 %v178, %v1509
  %v1534 = vmul.f32 %v179, %v1521
  %v1535 = vmul.f32 %v176, %v1518
  %v1536 = vmul.f32 %v177, %v1514
  %v1537 = vmul.f32 %v178, %v1510
  %v1538 = vmul.f32 %v179, %v1522
  %v1539 = vadd.f32 %v1459, %v1523
  %v1540 = vadd.f32 %v1460, %v1524
  %v1541 = vadd.f32 %v1461, %v1525
  %v1542 = vadd.f32 %v1462, %v1526
  %v1543 = vadd.f32 %v1463, %v1527
  %v1544 = vadd.f32 %v1464, %v1528
  %v1545 = vadd.f32 %v1465, %v1529
  %v1546 = vadd.f32 %v1466, %v1530
  %v1547 = vadd.f32 %v1467, %v1531
  %v1548 = vadd.f32 %v1468, %v1532
  %v1549 = vadd.f32 %v1469, %v1533
  %v1550 = vadd.f32 %v1470, %v1534
  %v1551 = vadd.f32 %v1471, %v1535
  %v1552 = vadd.f32 %v1472, %v1536
  %v1553 = vadd.f32 %v1473, %v1537
  %v1554 = vadd.f32 %v1474, %v1538
  %1555 = vrot.lane.b32.xlu0 %v1539, 1
  %v1556 = vpop.permute.xlu0 %1555
  %1557 = vrot.lane.b32.xlu0 %v1543, 1
  %v1558 = vpop.permute.xlu0 %1557
  %1559 = vrot.lane.b32.xlu0 %v1547, 1
  %v1560 = vpop.permute.xlu0 %1559
  %1561 = vrot.lane.b32.xlu0 %v1551, 1
  %v1562 = vpop.permute.xlu0 %1561
  %1563 = vrot.lane.b32.xlu0 %v1540, 1
  %v1564 = vpop.permute.xlu0 %1563
  %1565 = vrot.lane.b32.xlu0 %v1544, 1
  %v1566 = vpop.permute.xlu0 %1565
  %1567 = vrot.lane.b32.xlu0 %v1548, 1
  %v1568 = vpop.permute.xlu0 %1567
  %1569 = vrot.lane.b32.xlu0 %v1552, 1
  %v1570 = vpop.permute.xlu0 %1569
  %1571 = vrot.lane.b32.xlu0 %v1541, 1
  %v1572 = vpop.permute.xlu0 %1571
  %1573 = vrot.lane.b32.xlu0 %v1545, 1
  %v1574 = vpop.permute.xlu0 %1573
  %1575 = vrot.lane.b32.xlu0 %v1549, 1
  %v1576 = vpop.permute.xlu0 %1575
  %1577 = vrot.lane.b32.xlu0 %v1553, 1
  %v1578 = vpop.permute.xlu0 %1577
  %1579 = vrot.lane.b32.xlu0 %v1542, 1
  %v1580 = vpop.permute.xlu0 %1579
  %1581 = vrot.lane.b32.xlu0 %v1546, 1
  %v1582 = vpop.permute.xlu0 %1581
  %1583 = vrot.lane.b32.xlu0 %v1550, 1
  %v1584 = vpop.permute.xlu0 %1583
  %1585 = vrot.lane.b32.xlu0 %v1554, 1
  %v1586 = vpop.permute.xlu0 %1585
  %v1587 = vsel %vm244, %v1572, %v1580
  %v1588 = vsel %vm244, %v1574, %v1582
  %v1589 = vsel %vm244, %v1576, %v1584
  %v1590 = vsel %vm244, %v1578, %v1586
  %v1591 = vsel %vm244, %v1564, %v1572
  %v1592 = vsel %vm244, %v1566, %v1574
  %v1593 = vsel %vm244, %v1568, %v1576
  %v1594 = vsel %vm244, %v1570, %v1578
  %v1595 = vsel %vm244, %v1556, %v1564
  %v1596 = vsel %vm244, %v1558, %v1566
  %v1597 = vsel %vm244, %v1560, %v1568
  %v1598 = vsel %vm244, %v1562, %v1570
  %v1599 = vsel %vm244, %v1580, %v1556
  %v1600 = vsel %vm244, %v1582, %v1558
  %v1601 = vsel %vm244, %v1584, %v1560
  %v1602 = vsel %vm244, %v1586, %v1562
  %v1603 = vmul.f32 %v261, %v1599
  %v1604 = vmul.f32 %v262, %v1595
  %v1605 = vmul.f32 %v263, %v1591
  %v1606 = vmul.f32 %v264, %v1587
  %v1607 = vmul.f32 %v261, %v1600
  %v1608 = vmul.f32 %v262, %v1596
  %v1609 = vmul.f32 %v263, %v1592
  %v1610 = vmul.f32 %v264, %v1588
  %v1611 = vmul.f32 %v261, %v1601
  %v1612 = vmul.f32 %v262, %v1597
  %v1613 = vmul.f32 %v263, %v1593
  %v1614 = vmul.f32 %v264, %v1589
  %v1615 = vmul.f32 %v261, %v1602
  %v1616 = vmul.f32 %v262, %v1598
  %v1617 = vmul.f32 %v263, %v1594
  %v1618 = vmul.f32 %v264, %v1590
  %v1619 = vadd.f32 %v1539, %v1603
  %v1620 = vadd.f32 %v1540, %v1604
  %v1621 = vadd.f32 %v1541, %v1605
  %v1622 = vadd.f32 %v1542, %v1606
  %v1623 = vadd.f32 %v1543, %v1607
  %v1624 = vadd.f32 %v1544, %v1608
  %v1625 = vadd.f32 %v1545, %v1609
  %v1626 = vadd.f32 %v1546, %v1610
  %v1627 = vadd.f32 %v1547, %v1611
  %v1628 = vadd.f32 %v1548, %v1612
  %v1629 = vadd.f32 %v1549, %v1613
  %v1630 = vadd.f32 %v1550, %v1614
  %v1631 = vadd.f32 %v1551, %v1615
  %v1632 = vadd.f32 %v1552, %v1616
  %v1633 = vadd.f32 %v1553, %v1617
  %v1634 = vadd.f32 %v1554, %v1618
  %1635 = vrot.lane.b32.xlu0 %v1539, 127
  %v1636 = vpop.permute.xlu0 %1635
  %1637 = vrot.lane.b32.xlu0 %v1543, 127
  %v1638 = vpop.permute.xlu0 %1637
  %1639 = vrot.lane.b32.xlu0 %v1547, 127
  %v1640 = vpop.permute.xlu0 %1639
  %1641 = vrot.lane.b32.xlu0 %v1551, 127
  %v1642 = vpop.permute.xlu0 %1641
  %1643 = vrot.lane.b32.xlu0 %v1540, 127
  %v1644 = vpop.permute.xlu0 %1643
  %1645 = vrot.lane.b32.xlu0 %v1544, 127
  %v1646 = vpop.permute.xlu0 %1645
  %1647 = vrot.lane.b32.xlu0 %v1548, 127
  %v1648 = vpop.permute.xlu0 %1647
  %1649 = vrot.lane.b32.xlu0 %v1552, 127
  %v1650 = vpop.permute.xlu0 %1649
  %1651 = vrot.lane.b32.xlu0 %v1541, 127
  %v1652 = vpop.permute.xlu0 %1651
  %1653 = vrot.lane.b32.xlu0 %v1545, 127
  %v1654 = vpop.permute.xlu0 %1653
  %1655 = vrot.lane.b32.xlu0 %v1549, 127
  %v1656 = vpop.permute.xlu0 %1655
  %1657 = vrot.lane.b32.xlu0 %v1553, 127
  %v1658 = vpop.permute.xlu0 %1657
  %1659 = vrot.lane.b32.xlu0 %v1542, 127
  %v1660 = vpop.permute.xlu0 %1659
  %1661 = vrot.lane.b32.xlu0 %v1546, 127
  %v1662 = vpop.permute.xlu0 %1661
  %1663 = vrot.lane.b32.xlu0 %v1550, 127
  %v1664 = vpop.permute.xlu0 %1663
  %1665 = vrot.lane.b32.xlu0 %v1554, 127
  %v1666 = vpop.permute.xlu0 %1665
  %v1667 = vsel %vm329, %v1652, %v1660
  %v1668 = vsel %vm329, %v1654, %v1662
  %v1669 = vsel %vm329, %v1656, %v1664
  %v1670 = vsel %vm329, %v1658, %v1666
  %v1671 = vsel %vm329, %v1644, %v1652
  %v1672 = vsel %vm329, %v1646, %v1654
  %v1673 = vsel %vm329, %v1648, %v1656
  %v1674 = vsel %vm329, %v1650, %v1658
  %v1675 = vsel %vm329, %v1636, %v1644
  %v1676 = vsel %vm329, %v1638, %v1646
  %v1677 = vsel %vm329, %v1640, %v1648
  %v1678 = vsel %vm329, %v1642, %v1650
  %v1679 = vsel %vm329, %v1660, %v1636
  %v1680 = vsel %vm329, %v1662, %v1638
  %v1681 = vsel %vm329, %v1664, %v1640
  %v1682 = vsel %vm329, %v1666, %v1642
  %v1683 = vmul.f32 %v346, %v1675
  %v1684 = vmul.f32 %v347, %v1671
  %v1685 = vmul.f32 %v348, %v1667
  %v1686 = vmul.f32 %v349, %v1679
  %v1687 = vmul.f32 %v346, %v1676
  %v1688 = vmul.f32 %v347, %v1672
  %v1689 = vmul.f32 %v348, %v1668
  %v1690 = vmul.f32 %v349, %v1680
  %v1691 = vmul.f32 %v346, %v1677
  %v1692 = vmul.f32 %v347, %v1673
  %v1693 = vmul.f32 %v348, %v1669
  %v1694 = vmul.f32 %v349, %v1681
  %v1695 = vmul.f32 %v346, %v1678
  %v1696 = vmul.f32 %v347, %v1674
  %v1697 = vmul.f32 %v348, %v1670
  %v1698 = vmul.f32 %v349, %v1682
  %v1699 = vadd.f32 %v1619, %v1683
  %v1700 = vadd.f32 %v1620, %v1684
  %v1701 = vadd.f32 %v1621, %v1685
  %v1702 = vadd.f32 %v1622, %v1686
  %v1703 = vadd.f32 %v1623, %v1687
  %v1704 = vadd.f32 %v1624, %v1688
  %v1705 = vadd.f32 %v1625, %v1689
  %v1706 = vadd.f32 %v1626, %v1690
  %v1707 = vadd.f32 %v1627, %v1691
  %v1708 = vadd.f32 %v1628, %v1692
  %v1709 = vadd.f32 %v1629, %v1693
  %v1710 = vadd.f32 %v1630, %v1694
  %v1711 = vadd.f32 %v1631, %v1695
  %v1712 = vadd.f32 %v1632, %v1696
  %v1713 = vadd.f32 %v1633, %v1697
  %v1714 = vadd.f32 %v1634, %v1698
  %v1715 = vmul.f32 %v1699, %v382
  %v1716 = vmul.f32 %v1700, %v383
  %v1717 = vmul.f32 %v1701, %v384
  %v1718 = vmul.f32 %v1702, %v385
  %v1719 = vmul.f32 %v1703, %v382
  %v1720 = vmul.f32 %v1704, %v383
  %v1721 = vmul.f32 %v1705, %v384
  %v1722 = vmul.f32 %v1706, %v385
  %v1723 = vmul.f32 %v1707, %v382
  %v1724 = vmul.f32 %v1708, %v383
  %v1725 = vmul.f32 %v1709, %v384
  %v1726 = vmul.f32 %v1710, %v385
  %v1727 = vmul.f32 %v1711, %v382
  %v1728 = vmul.f32 %v1712, %v383
  %v1729 = vmul.f32 %v1713, %v384
  %v1730 = vmul.f32 %v1714, %v385
  %v1731 = vadd.f32 %v1379, %v1715
  %v1732 = vadd.f32 %v1380, %v1716
  %v1733 = vadd.f32 %v1381, %v1717
  %v1734 = vadd.f32 %v1382, %v1718
  %v1735 = vadd.f32 %v1383, %v1719
  %v1736 = vadd.f32 %v1384, %v1720
  %v1737 = vadd.f32 %v1385, %v1721
  %v1738 = vadd.f32 %v1386, %v1722
  %v1739 = vadd.f32 %v1387, %v1723
  %v1740 = vadd.f32 %v1388, %v1724
  %v1741 = vadd.f32 %v1389, %v1725
  %v1742 = vadd.f32 %v1390, %v1726
  %v1743 = vadd.f32 %v1391, %v1727
  %v1744 = vadd.f32 %v1392, %v1728
  %v1745 = vadd.f32 %v1393, %v1729
  %v1746 = vadd.f32 %v1394, %v1730
  %s1747 = scalar_lea.vmem %s4, 224
  %v1748 = vld [vmem:[%s1747] sm:$0xff]
  %v1749 = vld [vmem:[%s1747 + $0x8] sm:$0xff]
  %v1750 = vld [vmem:[%s1747 + $0x10] sm:$0xff]
  %v1751 = vld [vmem:[%s1747 + $0x18] sm:$0xff]
  %v1752 = vld [vmem:[%s1747 + $0x20] sm:$0xff]
  %v1753 = vld [vmem:[%s1747 + $0x28] sm:$0xff]
  %v1754 = vld [vmem:[%s1747 + $0x30] sm:$0xff]
  %v1755 = vld [vmem:[%s1747 + $0x38] sm:$0xff]
  %v1756 = vld [vmem:[%s1747 + $0x40] sm:$0xff]
  %v1757 = vld [vmem:[%s1747 + $0x48] sm:$0xff]
  %v1758 = vld [vmem:[%s1747 + $0x50] sm:$0xff]
  %v1759 = vld [vmem:[%s1747 + $0x58] sm:$0xff]
  %v1760 = vld [vmem:[%s1747 + $0x60] sm:$0xff]
  %v1761 = vld [vmem:[%s1747 + $0x68] sm:$0xff]
  %v1762 = vld [vmem:[%s1747 + $0x70] sm:$0xff]
  %v1763 = vld [vmem:[%s1747 + $0x78] sm:$0xff]
  %v1764 = vld [vmem:[%s1747 + $0x80] sm:$0xff]
  %v1765 = vld [vmem:[%s1747 + $0x88] sm:$0xff]
  %v1766 = vld [vmem:[%s1747 + $0x90] sm:$0xff]
  %v1767 = vld [vmem:[%s1747 + $0x98] sm:$0xff]
  %v1768 = vld [vmem:[%s1747 + $0xa0] sm:$0xff]
  %v1769 = vld [vmem:[%s1747 + $0xa8] sm:$0xff]
  %v1770 = vld [vmem:[%s1747 + $0xb0] sm:$0xff]
  %v1771 = vld [vmem:[%s1747 + $0xb8] sm:$0xff]
  %v1772 = vld [vmem:[%s1747 + $0xc0] sm:$0xff]
  %v1773 = vld [vmem:[%s1747 + $0xc8] sm:$0xff]
  %v1774 = vld [vmem:[%s1747 + $0xd0] sm:$0xff]
  %v1775 = vld [vmem:[%s1747 + $0xd8] sm:$0xff]
  %v1776 = vadd.f32 %v1731, %v1735
  %v1777 = vadd.f32 %v1776, %v1739
  %v1778 = vadd.f32 %v1777, %v1743
  %v1779 = vrot.slane %v1778, 4
  %v1780 = vadd.f32 %v1778, %v1779
  %v1781 = vrot.slane %v1780, 2
  %v1782 = vadd.f32 %v1780, %v1781
  %v1783 = vrot.slane %v1782, 1
  %v1784 = vadd.f32 %v1782, %v1783
  %v1785 = vadd.f32 %v1732, %v1736
  %v1786 = vadd.f32 %v1785, %v1740
  %v1787 = vadd.f32 %v1786, %v1744
  %v1788 = vrot.slane %v1787, 4
  %v1789 = vadd.f32 %v1787, %v1788
  %v1790 = vrot.slane %v1789, 2
  %v1791 = vadd.f32 %v1789, %v1790
  %v1792 = vrot.slane %v1791, 1
  %v1793 = vadd.f32 %v1791, %v1792
  %v1794 = vadd.f32 %v1733, %v1737
  %v1795 = vadd.f32 %v1794, %v1741
  %v1796 = vadd.f32 %v1795, %v1745
  %v1797 = vrot.slane %v1796, 4
  %v1798 = vadd.f32 %v1796, %v1797
  %v1799 = vrot.slane %v1798, 2
  %v1800 = vadd.f32 %v1798, %v1799
  %v1801 = vrot.slane %v1800, 1
  %v1802 = vadd.f32 %v1800, %v1801
  %v1803 = vadd.f32 %v1734, %v1738
  %v1804 = vadd.f32 %v1803, %v1742
  %v1805 = vadd.f32 %v1804, %v1746
  %v1806 = vrot.slane %v1805, 4
  %v1807 = vadd.f32 %v1805, %v1806
  %v1808 = vrot.slane %v1807, 2
  %v1809 = vadd.f32 %v1807, %v1808
  %v1810 = vrot.slane %v1809, 1
  %v1811 = vadd.f32 %v1809, %v1810
  %v1812 = vmul.f32 %v1784, %v488
  %v1813 = vmul.f32 %v1793, %v488
  %v1814 = vmul.f32 %v1802, %v488
  %v1815 = vmul.f32 %v1811, %v488
  %v1816 = vmul.f32 %v1731, %v1731
  %v1817 = vmul.f32 %v1732, %v1732
  %v1818 = vmul.f32 %v1733, %v1733
  %v1819 = vmul.f32 %v1734, %v1734
  %v1820 = vmul.f32 %v1735, %v1735
  %v1821 = vmul.f32 %v1736, %v1736
  %v1822 = vmul.f32 %v1737, %v1737
  %v1823 = vmul.f32 %v1738, %v1738
  %v1824 = vmul.f32 %v1739, %v1739
  %v1825 = vmul.f32 %v1740, %v1740
  %v1826 = vmul.f32 %v1741, %v1741
  %v1827 = vmul.f32 %v1742, %v1742
  %v1828 = vmul.f32 %v1743, %v1743
  %v1829 = vmul.f32 %v1744, %v1744
  %v1830 = vmul.f32 %v1745, %v1745
  %v1831 = vmul.f32 %v1746, %v1746
  %v1832 = vadd.f32 %v1816, %v1820
  %v1833 = vadd.f32 %v1832, %v1824
  %v1834 = vadd.f32 %v1833, %v1828
  %v1835 = vrot.slane %v1834, 4
  %v1836 = vadd.f32 %v1834, %v1835
  %v1837 = vrot.slane %v1836, 2
  %v1838 = vadd.f32 %v1836, %v1837
  %v1839 = vrot.slane %v1838, 1
  %v1840 = vadd.f32 %v1838, %v1839
  %v1841 = vadd.f32 %v1817, %v1821
  %v1842 = vadd.f32 %v1841, %v1825
  %v1843 = vadd.f32 %v1842, %v1829
  %v1844 = vrot.slane %v1843, 4
  %v1845 = vadd.f32 %v1843, %v1844
  %v1846 = vrot.slane %v1845, 2
  %v1847 = vadd.f32 %v1845, %v1846
  %v1848 = vrot.slane %v1847, 1
  %v1849 = vadd.f32 %v1847, %v1848
  %v1850 = vadd.f32 %v1818, %v1822
  %v1851 = vadd.f32 %v1850, %v1826
  %v1852 = vadd.f32 %v1851, %v1830
  %v1853 = vrot.slane %v1852, 4
  %v1854 = vadd.f32 %v1852, %v1853
  %v1855 = vrot.slane %v1854, 2
  %v1856 = vadd.f32 %v1854, %v1855
  %v1857 = vrot.slane %v1856, 1
  %v1858 = vadd.f32 %v1856, %v1857
  %v1859 = vadd.f32 %v1819, %v1823
  %v1860 = vadd.f32 %v1859, %v1827
  %v1861 = vadd.f32 %v1860, %v1831
  %v1862 = vrot.slane %v1861, 4
  %v1863 = vadd.f32 %v1861, %v1862
  %v1864 = vrot.slane %v1863, 2
  %v1865 = vadd.f32 %v1863, %v1864
  %v1866 = vrot.slane %v1865, 1
  %v1867 = vadd.f32 %v1865, %v1866
  %v1868 = vmul.f32 %v1840, %v488
  %v1869 = vmul.f32 %v1849, %v488
  %v1870 = vmul.f32 %v1858, %v488
  %v1871 = vmul.f32 %v1867, %v488
  %v1872 = vmul.f32 %v1812, %v1812
  %v1873 = vmul.f32 %v1813, %v1813
  %v1874 = vmul.f32 %v1814, %v1814
  %v1875 = vmul.f32 %v1815, %v1815
  %v1876 = vsub.f32 %v1868, %v1872
  %v1877 = vsub.f32 %v1869, %v1873
  %v1878 = vsub.f32 %v1870, %v1874
  %v1879 = vsub.f32 %v1871, %v1875
  %v1880 = vsub.f32 %v1731, %v1812
  %v1881 = vsub.f32 %v1732, %v1813
  %v1882 = vsub.f32 %v1733, %v1814
  %v1883 = vsub.f32 %v1734, %v1815
  %v1884 = vsub.f32 %v1735, %v1812
  %v1885 = vsub.f32 %v1736, %v1813
  %v1886 = vsub.f32 %v1737, %v1814
  %v1887 = vsub.f32 %v1738, %v1815
  %v1888 = vsub.f32 %v1739, %v1812
  %v1889 = vsub.f32 %v1740, %v1813
  %v1890 = vsub.f32 %v1741, %v1814
  %v1891 = vsub.f32 %v1742, %v1815
  %v1892 = vsub.f32 %v1743, %v1812
  %v1893 = vsub.f32 %v1744, %v1813
  %v1894 = vsub.f32 %v1745, %v1814
  %v1895 = vsub.f32 %v1746, %v1815
  %v1896 = vadd.f32 %v1876, 1e-05
  %v1897 = vadd.f32 %v1877, 1e-05
  %v1898 = vadd.f32 %v1878, 1e-05
  %v1899 = vadd.f32 %v1879, 1e-05
  %v1900 = vrsqrt.pop %v1896
  %v1901 = vmul.f32 %v1900, %v1896
  %v1902 = vmul.f32 %v1901, %v1900
  %v1903 = vmul.f32 0.5, %v1902
  %v1904 = vsub.f32 1.5, %v1903
  %v1905 = vmul.f32 %v1900, %v1904
  %vm1906 = vweird.f32 %v1896
  %vm1907 = vweird.f32 %v1900
  %vm1908 = vmor %vm1906, %vm1907
  %v1909 = vsel %vm1908, %v1900, %v1905
  %v1910 = vrsqrt.pop %v1897
  %v1911 = vmul.f32 %v1910, %v1897
  %v1912 = vmul.f32 %v1911, %v1910
  %v1913 = vmul.f32 0.5, %v1912
  %v1914 = vsub.f32 1.5, %v1913
  %v1915 = vmul.f32 %v1910, %v1914
  %vm1916 = vweird.f32 %v1897
  %vm1917 = vweird.f32 %v1910
  %vm1918 = vmor %vm1916, %vm1917
  %v1919 = vsel %vm1918, %v1910, %v1915
  %v1920 = vrsqrt.pop %v1898
  %v1921 = vmul.f32 %v1920, %v1898
  %v1922 = vmul.f32 %v1921, %v1920
  %v1923 = vmul.f32 0.5, %v1922
  %v1924 = vsub.f32 1.5, %v1923
  %v1925 = vmul.f32 %v1920, %v1924
  %vm1926 = vweird.f32 %v1898
  %vm1927 = vweird.f32 %v1920
  %vm1928 = vmor %vm1926, %vm1927
  %v1929 = vsel %vm1928, %v1920, %v1925
  %v1930 = vrsqrt.pop %v1899
  %v1931 = vmul.f32 %v1930, %v1899
  %v1932 = vmul.f32 %v1931, %v1930
  %v1933 = vmul.f32 0.5, %v1932
  %v1934 = vsub.f32 1.5, %v1933
  %v1935 = vmul.f32 %v1930, %v1934
  %vm1936 = vweird.f32 %v1899
  %vm1937 = vweird.f32 %v1930
  %vm1938 = vmor %vm1936, %vm1937
  %v1939 = vsel %vm1938, %v1930, %v1935
  %v1940 = vmul.f32 %v1880, %v1909
  %v1941 = vmul.f32 %v1881, %v1919
  %v1942 = vmul.f32 %v1882, %v1929
  %v1943 = vmul.f32 %v1883, %v1939
  %v1944 = vmul.f32 %v1884, %v1909
  %v1945 = vmul.f32 %v1885, %v1919
  %v1946 = vmul.f32 %v1886, %v1929
  %v1947 = vmul.f32 %v1887, %v1939
  %v1948 = vmul.f32 %v1888, %v1909
  %v1949 = vmul.f32 %v1889, %v1919
  %v1950 = vmul.f32 %v1890, %v1929
  %v1951 = vmul.f32 %v1891, %v1939
  %v1952 = vmul.f32 %v1892, %v1909
  %v1953 = vmul.f32 %v1893, %v1919
  %v1954 = vmul.f32 %v1894, %v1929
  %v1955 = vmul.f32 %v1895, %v1939
  %1957 = vset.pattern.permute.xlu0 0
  %1958 = vperm.xlu0 %1957, %v1760
  %v1959 = vpop.permute.xlu0 %1958
  %1962 = vset.pattern.permute.xlu0 0
  %1963 = vperm.xlu0 %1962, %v1761
  %v1964 = vpop.permute.xlu0 %1963
  %1967 = vset.pattern.permute.xlu0 0
  %1968 = vperm.xlu0 %1967, %v1762
  %v1969 = vpop.permute.xlu0 %1968
  %1972 = vset.pattern.permute.xlu0 0
  %1973 = vperm.xlu0 %1972, %v1763
  %v1974 = vpop.permute.xlu0 %1973
  %v1976 = vmul.f32 %v1940, %v1959
  %v1977 = vmul.f32 %v1941, %v1959
  %v1978 = vmul.f32 %v1942, %v1959
  %v1979 = vmul.f32 %v1943, %v1959
  %v1980 = vmul.f32 %v1944, %v1964
  %v1981 = vmul.f32 %v1945, %v1964
  %v1982 = vmul.f32 %v1946, %v1964
  %v1983 = vmul.f32 %v1947, %v1964
  %v1984 = vmul.f32 %v1948, %v1969
  %v1985 = vmul.f32 %v1949, %v1969
  %v1986 = vmul.f32 %v1950, %v1969
  %v1987 = vmul.f32 %v1951, %v1969
  %v1988 = vmul.f32 %v1952, %v1974
  %v1989 = vmul.f32 %v1953, %v1974
  %v1990 = vmul.f32 %v1954, %v1974
  %v1991 = vmul.f32 %v1955, %v1974
  %1993 = vset.pattern.permute.xlu0 0
  %1994 = vperm.xlu0 %1993, %v1764
  %v1995 = vpop.permute.xlu0 %1994
  %1998 = vset.pattern.permute.xlu0 0
  %1999 = vperm.xlu0 %1998, %v1765
  %v2000 = vpop.permute.xlu0 %1999
  %2003 = vset.pattern.permute.xlu0 0
  %2004 = vperm.xlu0 %2003, %v1766
  %v2005 = vpop.permute.xlu0 %2004
  %2008 = vset.pattern.permute.xlu0 0
  %2009 = vperm.xlu0 %2008, %v1767
  %v2010 = vpop.permute.xlu0 %2009
  %v2012 = vadd.f32 %v1976, %v1995
  %v2013 = vadd.f32 %v1977, %v1995
  %v2014 = vadd.f32 %v1978, %v1995
  %v2015 = vadd.f32 %v1979, %v1995
  %v2016 = vadd.f32 %v1980, %v2000
  %v2017 = vadd.f32 %v1981, %v2000
  %v2018 = vadd.f32 %v1982, %v2000
  %v2019 = vadd.f32 %v1983, %v2000
  %v2020 = vadd.f32 %v1984, %v2005
  %v2021 = vadd.f32 %v1985, %v2005
  %v2022 = vadd.f32 %v1986, %v2005
  %v2023 = vadd.f32 %v1987, %v2005
  %v2024 = vadd.f32 %v1988, %v2010
  %v2025 = vadd.f32 %v1989, %v2010
  %v2026 = vadd.f32 %v1990, %v2010
  %v2027 = vadd.f32 %v1991, %v2010
  %s2028 = scalar_lea.vmem %s2, 64
  %v2029 = vld [vmem:[%s2028] sm:$0xff]
  %v2030 = vld [vmem:[%s2028 + $0x8] sm:$0xff]
  %v2031 = vld [vmem:[%s2028 + $0x10] sm:$0xff]
  %v2032 = vld [vmem:[%s2028 + $0x18] sm:$0xff]
  %v2033 = vld [vmem:[%s2028 + $0x20] sm:$0xff]
  %v2034 = vld [vmem:[%s2028 + $0x28] sm:$0xff]
  %v2035 = vld [vmem:[%s2028 + $0x30] sm:$0xff]
  %v2036 = vld [vmem:[%s2028 + $0x38] sm:$0xff]
  %2038 = vset.pattern.permute.xlu0 0
  %2039 = vperm.xlu0 %2038, %v1748
  %v2040 = vpop.permute.xlu0 %2039
  %2043 = vset.pattern.permute.xlu0 0
  %2044 = vperm.xlu0 %2043, %v1749
  %v2045 = vpop.permute.xlu0 %2044
  %2048 = vset.pattern.permute.xlu0 0
  %2049 = vperm.xlu0 %2048, %v1750
  %v2050 = vpop.permute.xlu0 %2049
  %2053 = vset.pattern.permute.xlu0 0
  %2054 = vperm.xlu0 %2053, %v1751
  %v2055 = vpop.permute.xlu0 %2054
  %2058 = vset.pattern.permute.xlu0 0
  %2059 = vperm.xlu0 %2058, %v1752
  %v2060 = vpop.permute.xlu0 %2059
  %2063 = vset.pattern.permute.xlu0 0
  %2064 = vperm.xlu0 %2063, %v1753
  %v2065 = vpop.permute.xlu0 %2064
  %2068 = vset.pattern.permute.xlu0 0
  %2069 = vperm.xlu0 %2068, %v1754
  %v2070 = vpop.permute.xlu0 %2069
  %2073 = vset.pattern.permute.xlu0 0
  %2074 = vperm.xlu0 %2073, %v1755
  %v2075 = vpop.permute.xlu0 %2074
  %v2078 = vsel %vm753, %v2029, 0
  %v2081 = vsel %vm753, %v2030, 0
  %v2084 = vsel %vm753, %v2031, 0
  %v2087 = vsel %vm753, %v2032, 0
  %v2090 = vsel %vm753, %v2033, 0
  %v2093 = vsel %vm753, %v2034, 0
  %v2096 = vsel %vm753, %v2035, 0
  %v2099 = vsel %vm753, %v2036, 0
  %2101 = vmatpush.msra.mxu0 0.0
  %2102 = vmatpush.msra.mxu0 0.0
  %2103 = vmatpush.msra.mxu0 0.0
  %2104 = vmatpush.msra.mxu0 0.0
  %2105 = vmatpush.msra.mxu0 0.0
  %2106 = vmatpush.msra.mxu0 0.0
  %2107 = vmatpush.msra.mxu0 0.0
  %2108 = vmatpush.msra.mxu0 0.0
  %2109 = vmatpush.msra.mxu0 0.0
  %2110 = vmatpush.msra.mxu0 0.0
  %2111 = vmatpush.msra.mxu0 0.0
  %2112 = vmatpush.msra.mxu0 0.0
  %2113 = vmatpush.msra.mxu0 %v2024
  %2114 = vmatpush.msra.mxu0 %v2020
  %2115 = vmatpush.msra.mxu0 %v2016
  %2116 = vmatpush.msra.mxu0 %v2012
  %2117 = vmatmul.f32.gmra.mxu0 %v2078
  %v2118 = vpop.f32.mrf.mxu0
  %v2119 = vadd.f32 %v2040, %v2118
  %2120 = vmatmul.f32.gmra.mxu0 %v2081
  %v2121 = vpop.f32.mrf.mxu0
  %v2122 = vadd.f32 %v2045, %v2121
  %2123 = vmatmul.f32.gmra.mxu0 %v2084
  %v2124 = vpop.f32.mrf.mxu0
  %v2125 = vadd.f32 %v2050, %v2124
  %2126 = vmatmul.f32.gmra.mxu0 %v2087
  %v2127 = vpop.f32.mrf.mxu0
  %v2128 = vadd.f32 %v2055, %v2127
  %2129 = vmatmul.f32.gmra.mxu0 %v2090
  %v2130 = vpop.f32.mrf.mxu0
  %v2131 = vadd.f32 %v2060, %v2130
  %2132 = vmatmul.f32.gmra.mxu0 %v2093
  %v2133 = vpop.f32.mrf.mxu0
  %v2134 = vadd.f32 %v2065, %v2133
  %2135 = vmatmul.f32.gmra.mxu0 %v2096
  %v2136 = vpop.f32.mrf.mxu0
  %v2137 = vadd.f32 %v2070, %v2136
  %2138 = vmatmul.f32.gmra.mxu0 %v2099
  %v2139 = vpop.f32.mrf.mxu0
  %v2140 = vadd.f32 %v2075, %v2139
  %2141 = vdwg.mxu0
  %2142 = vmatpush.msra.mxu0 0.0
  %2143 = vmatpush.msra.mxu0 0.0
  %2144 = vmatpush.msra.mxu0 0.0
  %2145 = vmatpush.msra.mxu0 0.0
  %2146 = vmatpush.msra.mxu0 0.0
  %2147 = vmatpush.msra.mxu0 0.0
  %2148 = vmatpush.msra.mxu0 0.0
  %2149 = vmatpush.msra.mxu0 0.0
  %2150 = vmatpush.msra.mxu0 0.0
  %2151 = vmatpush.msra.mxu0 0.0
  %2152 = vmatpush.msra.mxu0 0.0
  %2153 = vmatpush.msra.mxu0 0.0
  %2154 = vmatpush.msra.mxu0 %v2025
  %2155 = vmatpush.msra.mxu0 %v2021
  %2156 = vmatpush.msra.mxu0 %v2017
  %2157 = vmatpush.msra.mxu0 %v2013
  %2158 = vmatmul.f32.gmra.mxu0 %v2078
  %v2159 = vpop.f32.mrf.mxu0
  %v2160 = vadd.f32 %v2040, %v2159
  %2161 = vmatmul.f32.gmra.mxu0 %v2081
  %v2162 = vpop.f32.mrf.mxu0
  %v2163 = vadd.f32 %v2045, %v2162
  %2164 = vmatmul.f32.gmra.mxu0 %v2084
  %v2165 = vpop.f32.mrf.mxu0
  %v2166 = vadd.f32 %v2050, %v2165
  %2167 = vmatmul.f32.gmra.mxu0 %v2087
  %v2168 = vpop.f32.mrf.mxu0
  %v2169 = vadd.f32 %v2055, %v2168
  %2170 = vmatmul.f32.gmra.mxu0 %v2090
  %v2171 = vpop.f32.mrf.mxu0
  %v2172 = vadd.f32 %v2060, %v2171
  %2173 = vmatmul.f32.gmra.mxu0 %v2093
  %v2174 = vpop.f32.mrf.mxu0
  %v2175 = vadd.f32 %v2065, %v2174
  %2176 = vmatmul.f32.gmra.mxu0 %v2096
  %v2177 = vpop.f32.mrf.mxu0
  %v2178 = vadd.f32 %v2070, %v2177
  %2179 = vmatmul.f32.gmra.mxu0 %v2099
  %v2180 = vpop.f32.mrf.mxu0
  %v2181 = vadd.f32 %v2075, %v2180
  %2182 = vdwg.mxu0
  %2183 = vmatpush.msra.mxu0 0.0
  %2184 = vmatpush.msra.mxu0 0.0
  %2185 = vmatpush.msra.mxu0 0.0
  %2186 = vmatpush.msra.mxu0 0.0
  %2187 = vmatpush.msra.mxu0 0.0
  %2188 = vmatpush.msra.mxu0 0.0
  %2189 = vmatpush.msra.mxu0 0.0
  %2190 = vmatpush.msra.mxu0 0.0
  %2191 = vmatpush.msra.mxu0 0.0
  %2192 = vmatpush.msra.mxu0 0.0
  %2193 = vmatpush.msra.mxu0 0.0
  %2194 = vmatpush.msra.mxu0 0.0
  %2195 = vmatpush.msra.mxu0 %v2026
  %2196 = vmatpush.msra.mxu0 %v2022
  %2197 = vmatpush.msra.mxu0 %v2018
  %2198 = vmatpush.msra.mxu0 %v2014
  %2199 = vmatmul.f32.gmra.mxu0 %v2078
  %v2200 = vpop.f32.mrf.mxu0
  %v2201 = vadd.f32 %v2040, %v2200
  %2202 = vmatmul.f32.gmra.mxu0 %v2081
  %v2203 = vpop.f32.mrf.mxu0
  %v2204 = vadd.f32 %v2045, %v2203
  %2205 = vmatmul.f32.gmra.mxu0 %v2084
  %v2206 = vpop.f32.mrf.mxu0
  %v2207 = vadd.f32 %v2050, %v2206
  %2208 = vmatmul.f32.gmra.mxu0 %v2087
  %v2209 = vpop.f32.mrf.mxu0
  %v2210 = vadd.f32 %v2055, %v2209
  %2211 = vmatmul.f32.gmra.mxu0 %v2090
  %v2212 = vpop.f32.mrf.mxu0
  %v2213 = vadd.f32 %v2060, %v2212
  %2214 = vmatmul.f32.gmra.mxu0 %v2093
  %v2215 = vpop.f32.mrf.mxu0
  %v2216 = vadd.f32 %v2065, %v2215
  %2217 = vmatmul.f32.gmra.mxu0 %v2096
  %v2218 = vpop.f32.mrf.mxu0
  %v2219 = vadd.f32 %v2070, %v2218
  %2220 = vmatmul.f32.gmra.mxu0 %v2099
  %v2221 = vpop.f32.mrf.mxu0
  %v2222 = vadd.f32 %v2075, %v2221
  %2223 = vdwg.mxu0
  %2224 = vmatpush.msra.mxu0 0.0
  %2225 = vmatpush.msra.mxu0 0.0
  %2226 = vmatpush.msra.mxu0 0.0
  %2227 = vmatpush.msra.mxu0 0.0
  %2228 = vmatpush.msra.mxu0 0.0
  %2229 = vmatpush.msra.mxu0 0.0
  %2230 = vmatpush.msra.mxu0 0.0
  %2231 = vmatpush.msra.mxu0 0.0
  %2232 = vmatpush.msra.mxu0 0.0
  %2233 = vmatpush.msra.mxu0 0.0
  %2234 = vmatpush.msra.mxu0 0.0
  %2235 = vmatpush.msra.mxu0 0.0
  %2236 = vmatpush.msra.mxu0 %v2027
  %2237 = vmatpush.msra.mxu0 %v2023
  %2238 = vmatpush.msra.mxu0 %v2019
  %2239 = vmatpush.msra.mxu0 %v2015
  %2240 = vmatmul.f32.gmra.mxu0 %v2078
  %v2241 = vpop.f32.mrf.mxu0
  %v2242 = vadd.f32 %v2040, %v2241
  %2243 = vmatmul.f32.gmra.mxu0 %v2081
  %v2244 = vpop.f32.mrf.mxu0
  %v2245 = vadd.f32 %v2045, %v2244
  %2246 = vmatmul.f32.gmra.mxu0 %v2084
  %v2247 = vpop.f32.mrf.mxu0
  %v2248 = vadd.f32 %v2050, %v2247
  %2249 = vmatmul.f32.gmra.mxu0 %v2087
  %v2250 = vpop.f32.mrf.mxu0
  %v2251 = vadd.f32 %v2055, %v2250
  %2252 = vmatmul.f32.gmra.mxu0 %v2090
  %v2253 = vpop.f32.mrf.mxu0
  %v2254 = vadd.f32 %v2060, %v2253
  %2255 = vmatmul.f32.gmra.mxu0 %v2093
  %v2256 = vpop.f32.mrf.mxu0
  %v2257 = vadd.f32 %v2065, %v2256
  %2258 = vmatmul.f32.gmra.mxu0 %v2096
  %v2259 = vpop.f32.mrf.mxu0
  %v2260 = vadd.f32 %v2070, %v2259
  %2261 = vmatmul.f32.gmra.mxu0 %v2099
  %v2262 = vpop.f32.mrf.mxu0
  %v2263 = vadd.f32 %v2075, %v2262
  %2264 = vdwg.mxu0
  %v2265 = vmax.f32 %v2119, 0.0
  %v2266 = vmax.f32 %v2160, 0.0
  %v2267 = vmax.f32 %v2201, 0.0
  %v2268 = vmax.f32 %v2242, 0.0
  %v2269 = vmax.f32 %v2122, 0.0
  %v2270 = vmax.f32 %v2163, 0.0
  %v2271 = vmax.f32 %v2204, 0.0
  %v2272 = vmax.f32 %v2245, 0.0
  %v2273 = vmax.f32 %v2125, 0.0
  %v2274 = vmax.f32 %v2166, 0.0
  %v2275 = vmax.f32 %v2207, 0.0
  %v2276 = vmax.f32 %v2248, 0.0
  %v2277 = vmax.f32 %v2128, 0.0
  %v2278 = vmax.f32 %v2169, 0.0
  %v2279 = vmax.f32 %v2210, 0.0
  %v2280 = vmax.f32 %v2251, 0.0
  %v2281 = vmax.f32 %v2131, 0.0
  %v2282 = vmax.f32 %v2172, 0.0
  %v2283 = vmax.f32 %v2213, 0.0
  %v2284 = vmax.f32 %v2254, 0.0
  %v2285 = vmax.f32 %v2134, 0.0
  %v2286 = vmax.f32 %v2175, 0.0
  %v2287 = vmax.f32 %v2216, 0.0
  %v2288 = vmax.f32 %v2257, 0.0
  %v2289 = vmax.f32 %v2137, 0.0
  %v2290 = vmax.f32 %v2178, 0.0
  %v2291 = vmax.f32 %v2219, 0.0
  %v2292 = vmax.f32 %v2260, 0.0
  %v2293 = vmax.f32 %v2140, 0.0
  %v2294 = vmax.f32 %v2181, 0.0
  %v2295 = vmax.f32 %v2222, 0.0
  %v2296 = vmax.f32 %v2263, 0.0
  %s2297 = scalar_lea.vmem %s3, 32
  %v2298 = vld [vmem:[%s2297] sm:$0xff]
  %v2299 = vld [vmem:[%s2297 + $0x8] sm:$0xff]
  %v2300 = vld [vmem:[%s2297 + $0x10] sm:$0xff]
  %v2301 = vld [vmem:[%s2297 + $0x18] sm:$0xff]
  %2303 = vset.pattern.permute.xlu0 0
  %2304 = vperm.xlu0 %2303, %v1756
  %v2305 = vpop.permute.xlu0 %2304
  %2308 = vset.pattern.permute.xlu0 0
  %2309 = vperm.xlu0 %2308, %v1757
  %v2310 = vpop.permute.xlu0 %2309
  %2313 = vset.pattern.permute.xlu0 0
  %2314 = vperm.xlu0 %2313, %v1758
  %v2315 = vpop.permute.xlu0 %2314
  %2318 = vset.pattern.permute.xlu0 0
  %2319 = vperm.xlu0 %2318, %v1759
  %v2320 = vpop.permute.xlu0 %2319
  %v2323 = vsel %vm998, %v2298, 0
  %v2326 = vsel %vm998, %v2299, 0
  %v2329 = vsel %vm998, %v2300, 0
  %v2332 = vsel %vm998, %v2301, 0
  %2334 = vmatpush.msra.mxu0 0.0
  %2335 = vmatpush.msra.mxu0 0.0
  %2336 = vmatpush.msra.mxu0 0.0
  %2337 = vmatpush.msra.mxu0 0.0
  %2338 = vmatpush.msra.mxu0 0.0
  %2339 = vmatpush.msra.mxu0 0.0
  %2340 = vmatpush.msra.mxu0 0.0
  %2341 = vmatpush.msra.mxu0 0.0
  %2342 = vmatpush.msra.mxu0 %v2293
  %2343 = vmatpush.msra.mxu0 %v2289
  %2344 = vmatpush.msra.mxu0 %v2285
  %2345 = vmatpush.msra.mxu0 %v2281
  %2346 = vmatpush.msra.mxu0 %v2277
  %2347 = vmatpush.msra.mxu0 %v2273
  %2348 = vmatpush.msra.mxu0 %v2269
  %2349 = vmatpush.msra.mxu0 %v2265
  %2350 = vmatmul.f32.gmra.mxu0 %v2323
  %v2351 = vpop.f32.mrf.mxu0
  %v2352 = vadd.f32 %v2305, %v2351
  %2353 = vmatmul.f32.gmra.mxu0 %v2326
  %v2354 = vpop.f32.mrf.mxu0
  %v2355 = vadd.f32 %v2310, %v2354
  %2356 = vmatmul.f32.gmra.mxu0 %v2329
  %v2357 = vpop.f32.mrf.mxu0
  %v2358 = vadd.f32 %v2315, %v2357
  %2359 = vmatmul.f32.gmra.mxu0 %v2332
  %v2360 = vpop.f32.mrf.mxu0
  %v2361 = vadd.f32 %v2320, %v2360
  %2362 = vdwg.mxu0
  %2363 = vmatpush.msra.mxu0 0.0
  %2364 = vmatpush.msra.mxu0 0.0
  %2365 = vmatpush.msra.mxu0 0.0
  %2366 = vmatpush.msra.mxu0 0.0
  %2367 = vmatpush.msra.mxu0 0.0
  %2368 = vmatpush.msra.mxu0 0.0
  %2369 = vmatpush.msra.mxu0 0.0
  %2370 = vmatpush.msra.mxu0 0.0
  %2371 = vmatpush.msra.mxu0 %v2294
  %2372 = vmatpush.msra.mxu0 %v2290
  %2373 = vmatpush.msra.mxu0 %v2286
  %2374 = vmatpush.msra.mxu0 %v2282
  %2375 = vmatpush.msra.mxu0 %v2278
  %2376 = vmatpush.msra.mxu0 %v2274
  %2377 = vmatpush.msra.mxu0 %v2270
  %2378 = vmatpush.msra.mxu0 %v2266
  %2379 = vmatmul.f32.gmra.mxu0 %v2323
  %v2380 = vpop.f32.mrf.mxu0
  %v2381 = vadd.f32 %v2305, %v2380
  %2382 = vmatmul.f32.gmra.mxu0 %v2326
  %v2383 = vpop.f32.mrf.mxu0
  %v2384 = vadd.f32 %v2310, %v2383
  %2385 = vmatmul.f32.gmra.mxu0 %v2329
  %v2386 = vpop.f32.mrf.mxu0
  %v2387 = vadd.f32 %v2315, %v2386
  %2388 = vmatmul.f32.gmra.mxu0 %v2332
  %v2389 = vpop.f32.mrf.mxu0
  %v2390 = vadd.f32 %v2320, %v2389
  %2391 = vdwg.mxu0
  %2392 = vmatpush.msra.mxu0 0.0
  %2393 = vmatpush.msra.mxu0 0.0
  %2394 = vmatpush.msra.mxu0 0.0
  %2395 = vmatpush.msra.mxu0 0.0
  %2396 = vmatpush.msra.mxu0 0.0
  %2397 = vmatpush.msra.mxu0 0.0
  %2398 = vmatpush.msra.mxu0 0.0
  %2399 = vmatpush.msra.mxu0 0.0
  %2400 = vmatpush.msra.mxu0 %v2295
  %2401 = vmatpush.msra.mxu0 %v2291
  %2402 = vmatpush.msra.mxu0 %v2287
  %2403 = vmatpush.msra.mxu0 %v2283
  %2404 = vmatpush.msra.mxu0 %v2279
  %2405 = vmatpush.msra.mxu0 %v2275
  %2406 = vmatpush.msra.mxu0 %v2271
  %2407 = vmatpush.msra.mxu0 %v2267
  %2408 = vmatmul.f32.gmra.mxu0 %v2323
  %v2409 = vpop.f32.mrf.mxu0
  %v2410 = vadd.f32 %v2305, %v2409
  %2411 = vmatmul.f32.gmra.mxu0 %v2326
  %v2412 = vpop.f32.mrf.mxu0
  %v2413 = vadd.f32 %v2310, %v2412
  %2414 = vmatmul.f32.gmra.mxu0 %v2329
  %v2415 = vpop.f32.mrf.mxu0
  %v2416 = vadd.f32 %v2315, %v2415
  %2417 = vmatmul.f32.gmra.mxu0 %v2332
  %v2418 = vpop.f32.mrf.mxu0
  %v2419 = vadd.f32 %v2320, %v2418
  %2420 = vdwg.mxu0
  %2421 = vmatpush.msra.mxu0 0.0
  %2422 = vmatpush.msra.mxu0 0.0
  %2423 = vmatpush.msra.mxu0 0.0
  %2424 = vmatpush.msra.mxu0 0.0
  %2425 = vmatpush.msra.mxu0 0.0
  %2426 = vmatpush.msra.mxu0 0.0
  %2427 = vmatpush.msra.mxu0 0.0
  %2428 = vmatpush.msra.mxu0 0.0
  %2429 = vmatpush.msra.mxu0 %v2296
  %2430 = vmatpush.msra.mxu0 %v2292
  %2431 = vmatpush.msra.mxu0 %v2288
  %2432 = vmatpush.msra.mxu0 %v2284
  %2433 = vmatpush.msra.mxu0 %v2280
  %2434 = vmatpush.msra.mxu0 %v2276
  %2435 = vmatpush.msra.mxu0 %v2272
  %2436 = vmatpush.msra.mxu0 %v2268
  %2437 = vmatmul.f32.gmra.mxu0 %v2323
  %v2438 = vpop.f32.mrf.mxu0
  %v2439 = vadd.f32 %v2305, %v2438
  %2440 = vmatmul.f32.gmra.mxu0 %v2326
  %v2441 = vpop.f32.mrf.mxu0
  %v2442 = vadd.f32 %v2310, %v2441
  %2443 = vmatmul.f32.gmra.mxu0 %v2329
  %v2444 = vpop.f32.mrf.mxu0
  %v2445 = vadd.f32 %v2315, %v2444
  %2446 = vmatmul.f32.gmra.mxu0 %v2332
  %v2447 = vpop.f32.mrf.mxu0
  %v2448 = vadd.f32 %v2320, %v2447
  %2449 = vdwg.mxu0
  %v2450 = vadd.f32 %v2012, %v2352
  %v2451 = vadd.f32 %v2013, %v2381
  %v2452 = vadd.f32 %v2014, %v2410
  %v2453 = vadd.f32 %v2015, %v2439
  %v2454 = vadd.f32 %v2016, %v2355
  %v2455 = vadd.f32 %v2017, %v2384
  %v2456 = vadd.f32 %v2018, %v2413
  %v2457 = vadd.f32 %v2019, %v2442
  %v2458 = vadd.f32 %v2020, %v2358
  %v2459 = vadd.f32 %v2021, %v2387
  %v2460 = vadd.f32 %v2022, %v2416
  %v2461 = vadd.f32 %v2023, %v2445
  %v2462 = vadd.f32 %v2024, %v2361
  %v2463 = vadd.f32 %v2025, %v2390
  %v2464 = vadd.f32 %v2026, %v2419
  %v2465 = vadd.f32 %v2027, %v2448
  %v2466 = vadd.f32 %v2450, %v2454
  %v2467 = vadd.f32 %v2466, %v2458
  %v2468 = vadd.f32 %v2467, %v2462
  %v2469 = vrot.slane %v2468, 4
  %v2470 = vadd.f32 %v2468, %v2469
  %v2471 = vrot.slane %v2470, 2
  %v2472 = vadd.f32 %v2470, %v2471
  %v2473 = vrot.slane %v2472, 1
  %v2474 = vadd.f32 %v2472, %v2473
  %v2475 = vadd.f32 %v2451, %v2455
  %v2476 = vadd.f32 %v2475, %v2459
  %v2477 = vadd.f32 %v2476, %v2463
  %v2478 = vrot.slane %v2477, 4
  %v2479 = vadd.f32 %v2477, %v2478
  %v2480 = vrot.slane %v2479, 2
  %v2481 = vadd.f32 %v2479, %v2480
  %v2482 = vrot.slane %v2481, 1
  %v2483 = vadd.f32 %v2481, %v2482
  %v2484 = vadd.f32 %v2452, %v2456
  %v2485 = vadd.f32 %v2484, %v2460
  %v2486 = vadd.f32 %v2485, %v2464
  %v2487 = vrot.slane %v2486, 4
  %v2488 = vadd.f32 %v2486, %v2487
  %v2489 = vrot.slane %v2488, 2
  %v2490 = vadd.f32 %v2488, %v2489
  %v2491 = vrot.slane %v2490, 1
  %v2492 = vadd.f32 %v2490, %v2491
  %v2493 = vadd.f32 %v2453, %v2457
  %v2494 = vadd.f32 %v2493, %v2461
  %v2495 = vadd.f32 %v2494, %v2465
  %v2496 = vrot.slane %v2495, 4
  %v2497 = vadd.f32 %v2495, %v2496
  %v2498 = vrot.slane %v2497, 2
  %v2499 = vadd.f32 %v2497, %v2498
  %v2500 = vrot.slane %v2499, 1
  %v2501 = vadd.f32 %v2499, %v2500
  %v2502 = vmul.f32 %v2474, %v488
  %v2503 = vmul.f32 %v2483, %v488
  %v2504 = vmul.f32 %v2492, %v488
  %v2505 = vmul.f32 %v2501, %v488
  %v2506 = vmul.f32 %v2450, %v2450
  %v2507 = vmul.f32 %v2451, %v2451
  %v2508 = vmul.f32 %v2452, %v2452
  %v2509 = vmul.f32 %v2453, %v2453
  %v2510 = vmul.f32 %v2454, %v2454
  %v2511 = vmul.f32 %v2455, %v2455
  %v2512 = vmul.f32 %v2456, %v2456
  %v2513 = vmul.f32 %v2457, %v2457
  %v2514 = vmul.f32 %v2458, %v2458
  %v2515 = vmul.f32 %v2459, %v2459
  %v2516 = vmul.f32 %v2460, %v2460
  %v2517 = vmul.f32 %v2461, %v2461
  %v2518 = vmul.f32 %v2462, %v2462
  %v2519 = vmul.f32 %v2463, %v2463
  %v2520 = vmul.f32 %v2464, %v2464
  %v2521 = vmul.f32 %v2465, %v2465
  %v2522 = vadd.f32 %v2506, %v2510
  %v2523 = vadd.f32 %v2522, %v2514
  %v2524 = vadd.f32 %v2523, %v2518
  %v2525 = vrot.slane %v2524, 4
  %v2526 = vadd.f32 %v2524, %v2525
  %v2527 = vrot.slane %v2526, 2
  %v2528 = vadd.f32 %v2526, %v2527
  %v2529 = vrot.slane %v2528, 1
  %v2530 = vadd.f32 %v2528, %v2529
  %v2531 = vadd.f32 %v2507, %v2511
  %v2532 = vadd.f32 %v2531, %v2515
  %v2533 = vadd.f32 %v2532, %v2519
  %v2534 = vrot.slane %v2533, 4
  %v2535 = vadd.f32 %v2533, %v2534
  %v2536 = vrot.slane %v2535, 2
  %v2537 = vadd.f32 %v2535, %v2536
  %v2538 = vrot.slane %v2537, 1
  %v2539 = vadd.f32 %v2537, %v2538
  %v2540 = vadd.f32 %v2508, %v2512
  %v2541 = vadd.f32 %v2540, %v2516
  %v2542 = vadd.f32 %v2541, %v2520
  %v2543 = vrot.slane %v2542, 4
  %v2544 = vadd.f32 %v2542, %v2543
  %v2545 = vrot.slane %v2544, 2
  %v2546 = vadd.f32 %v2544, %v2545
  %v2547 = vrot.slane %v2546, 1
  %v2548 = vadd.f32 %v2546, %v2547
  %v2549 = vadd.f32 %v2509, %v2513
  %v2550 = vadd.f32 %v2549, %v2517
  %v2551 = vadd.f32 %v2550, %v2521
  %v2552 = vrot.slane %v2551, 4
  %v2553 = vadd.f32 %v2551, %v2552
  %v2554 = vrot.slane %v2553, 2
  %v2555 = vadd.f32 %v2553, %v2554
  %v2556 = vrot.slane %v2555, 1
  %v2557 = vadd.f32 %v2555, %v2556
  %v2558 = vmul.f32 %v2530, %v488
  %v2559 = vmul.f32 %v2539, %v488
  %v2560 = vmul.f32 %v2548, %v488
  %v2561 = vmul.f32 %v2557, %v488
  %v2562 = vmul.f32 %v2502, %v2502
  %v2563 = vmul.f32 %v2503, %v2503
  %v2564 = vmul.f32 %v2504, %v2504
  %v2565 = vmul.f32 %v2505, %v2505
  %v2566 = vsub.f32 %v2558, %v2562
  %v2567 = vsub.f32 %v2559, %v2563
  %v2568 = vsub.f32 %v2560, %v2564
  %v2569 = vsub.f32 %v2561, %v2565
  %v2570 = vsub.f32 %v2450, %v2502
  %v2571 = vsub.f32 %v2451, %v2503
  %v2572 = vsub.f32 %v2452, %v2504
  %v2573 = vsub.f32 %v2453, %v2505
  %v2574 = vsub.f32 %v2454, %v2502
  %v2575 = vsub.f32 %v2455, %v2503
  %v2576 = vsub.f32 %v2456, %v2504
  %v2577 = vsub.f32 %v2457, %v2505
  %v2578 = vsub.f32 %v2458, %v2502
  %v2579 = vsub.f32 %v2459, %v2503
  %v2580 = vsub.f32 %v2460, %v2504
  %v2581 = vsub.f32 %v2461, %v2505
  %v2582 = vsub.f32 %v2462, %v2502
  %v2583 = vsub.f32 %v2463, %v2503
  %v2584 = vsub.f32 %v2464, %v2504
  %v2585 = vsub.f32 %v2465, %v2505
  %v2586 = vadd.f32 %v2566, 1e-05
  %v2587 = vadd.f32 %v2567, 1e-05
  %v2588 = vadd.f32 %v2568, 1e-05
  %v2589 = vadd.f32 %v2569, 1e-05
  %v2590 = vrsqrt.pop %v2586
  %v2591 = vmul.f32 %v2590, %v2586
  %v2592 = vmul.f32 %v2591, %v2590
  %v2593 = vmul.f32 0.5, %v2592
  %v2594 = vsub.f32 1.5, %v2593
  %v2595 = vmul.f32 %v2590, %v2594
  %vm2596 = vweird.f32 %v2586
  %vm2597 = vweird.f32 %v2590
  %vm2598 = vmor %vm2596, %vm2597
  %v2599 = vsel %vm2598, %v2590, %v2595
  %v2600 = vrsqrt.pop %v2587
  %v2601 = vmul.f32 %v2600, %v2587
  %v2602 = vmul.f32 %v2601, %v2600
  %v2603 = vmul.f32 0.5, %v2602
  %v2604 = vsub.f32 1.5, %v2603
  %v2605 = vmul.f32 %v2600, %v2604
  %vm2606 = vweird.f32 %v2587
  %vm2607 = vweird.f32 %v2600
  %vm2608 = vmor %vm2606, %vm2607
  %v2609 = vsel %vm2608, %v2600, %v2605
  %v2610 = vrsqrt.pop %v2588
  %v2611 = vmul.f32 %v2610, %v2588
  %v2612 = vmul.f32 %v2611, %v2610
  %v2613 = vmul.f32 0.5, %v2612
  %v2614 = vsub.f32 1.5, %v2613
  %v2615 = vmul.f32 %v2610, %v2614
  %vm2616 = vweird.f32 %v2588
  %vm2617 = vweird.f32 %v2610
  %vm2618 = vmor %vm2616, %vm2617
  %v2619 = vsel %vm2618, %v2610, %v2615
  %v2620 = vrsqrt.pop %v2589
  %v2621 = vmul.f32 %v2620, %v2589
  %v2622 = vmul.f32 %v2621, %v2620
  %v2623 = vmul.f32 0.5, %v2622
  %v2624 = vsub.f32 1.5, %v2623
  %v2625 = vmul.f32 %v2620, %v2624
  %vm2626 = vweird.f32 %v2589
  %vm2627 = vweird.f32 %v2620
  %vm2628 = vmor %vm2626, %vm2627
  %v2629 = vsel %vm2628, %v2620, %v2625
  %v2630 = vmul.f32 %v2570, %v2599
  %v2631 = vmul.f32 %v2571, %v2609
  %v2632 = vmul.f32 %v2572, %v2619
  %v2633 = vmul.f32 %v2573, %v2629
  %v2634 = vmul.f32 %v2574, %v2599
  %v2635 = vmul.f32 %v2575, %v2609
  %v2636 = vmul.f32 %v2576, %v2619
  %v2637 = vmul.f32 %v2577, %v2629
  %v2638 = vmul.f32 %v2578, %v2599
  %v2639 = vmul.f32 %v2579, %v2609
  %v2640 = vmul.f32 %v2580, %v2619
  %v2641 = vmul.f32 %v2581, %v2629
  %v2642 = vmul.f32 %v2582, %v2599
  %v2643 = vmul.f32 %v2583, %v2609
  %v2644 = vmul.f32 %v2584, %v2619
  %v2645 = vmul.f32 %v2585, %v2629
  %2647 = vset.pattern.permute.xlu0 0
  %2648 = vperm.xlu0 %2647, %v1768
  %v2649 = vpop.permute.xlu0 %2648
  %2652 = vset.pattern.permute.xlu0 0
  %2653 = vperm.xlu0 %2652, %v1769
  %v2654 = vpop.permute.xlu0 %2653
  %2657 = vset.pattern.permute.xlu0 0
  %2658 = vperm.xlu0 %2657, %v1770
  %v2659 = vpop.permute.xlu0 %2658
  %2662 = vset.pattern.permute.xlu0 0
  %2663 = vperm.xlu0 %2662, %v1771
  %v2664 = vpop.permute.xlu0 %2663
  %v2666 = vmul.f32 %v2630, %v2649
  %v2667 = vmul.f32 %v2631, %v2649
  %v2668 = vmul.f32 %v2632, %v2649
  %v2669 = vmul.f32 %v2633, %v2649
  %v2670 = vmul.f32 %v2634, %v2654
  %v2671 = vmul.f32 %v2635, %v2654
  %v2672 = vmul.f32 %v2636, %v2654
  %v2673 = vmul.f32 %v2637, %v2654
  %v2674 = vmul.f32 %v2638, %v2659
  %v2675 = vmul.f32 %v2639, %v2659
  %v2676 = vmul.f32 %v2640, %v2659
  %v2677 = vmul.f32 %v2641, %v2659
  %v2678 = vmul.f32 %v2642, %v2664
  %v2679 = vmul.f32 %v2643, %v2664
  %v2680 = vmul.f32 %v2644, %v2664
  %v2681 = vmul.f32 %v2645, %v2664
  %2683 = vset.pattern.permute.xlu0 0
  %2684 = vperm.xlu0 %2683, %v1772
  %v2685 = vpop.permute.xlu0 %2684
  %2688 = vset.pattern.permute.xlu0 0
  %2689 = vperm.xlu0 %2688, %v1773
  %v2690 = vpop.permute.xlu0 %2689
  %2693 = vset.pattern.permute.xlu0 0
  %2694 = vperm.xlu0 %2693, %v1774
  %v2695 = vpop.permute.xlu0 %2694
  %2698 = vset.pattern.permute.xlu0 0
  %2699 = vperm.xlu0 %2698, %v1775
  %v2700 = vpop.permute.xlu0 %2699
  %v2702 = vadd.f32 %v2666, %v2685
  %v2703 = vadd.f32 %v2667, %v2685
  %v2704 = vadd.f32 %v2668, %v2685
  %v2705 = vadd.f32 %v2669, %v2685
  %v2706 = vadd.f32 %v2670, %v2690
  %v2707 = vadd.f32 %v2671, %v2690
  %v2708 = vadd.f32 %v2672, %v2690
  %v2709 = vadd.f32 %v2673, %v2690
  %v2710 = vadd.f32 %v2674, %v2695
  %v2711 = vadd.f32 %v2675, %v2695
  %v2712 = vadd.f32 %v2676, %v2695
  %v2713 = vadd.f32 %v2677, %v2695
  %v2714 = vadd.f32 %v2678, %v2700
  %v2715 = vadd.f32 %v2679, %v2700
  %v2716 = vadd.f32 %v2680, %v2700
  %v2717 = vadd.f32 %v2681, %v2700
  %2718 = vst [vmem:[%s5] sm:$0xff] %v2702
  %2719 = vst [vmem:[%s5 + $0x8] sm:$0xff] %v2703
  %2720 = vst [vmem:[%s5 + $0x10] sm:$0xff] %v2704
  %2721 = vst [vmem:[%s5 + $0x18] sm:$0xff] %v2705
  %2722 = vst [vmem:[%s5 + $0x20] sm:$0xff] %v2706
  %2723 = vst [vmem:[%s5 + $0x28] sm:$0xff] %v2707
  %2724 = vst [vmem:[%s5 + $0x30] sm:$0xff] %v2708
  %2725 = vst [vmem:[%s5 + $0x38] sm:$0xff] %v2709
  %2726 = vst [vmem:[%s5 + $0x40] sm:$0xff] %v2710
  %2727 = vst [vmem:[%s5 + $0x48] sm:$0xff] %v2711
  %2728 = vst [vmem:[%s5 + $0x50] sm:$0xff] %v2712
  %2729 = vst [vmem:[%s5 + $0x58] sm:$0xff] %v2713
  %2730 = vst [vmem:[%s5 + $0x60] sm:$0xff] %v2714
  %2731 = vst [vmem:[%s5 + $0x68] sm:$0xff] %v2715
  %2732 = vst [vmem:[%s5 + $0x70] sm:$0xff] %v2716
  %2733 = vst [vmem:[%s5 + $0x78] sm:$0xff] %v2717
  // Predicated region
  $region22: #{win_encoder_transformer_forward.1} parent=0 // pred_check
    _
  $region23: #{win_encoder_transformer_forward.1} parent=0 // pred_check_branch
    %2735 = sbr.rel (0) target = $region25
  $region24: #{win_encoder_transformer_forward.1} parent=0 // pred_region
    _
  $region25: #{win_encoder_transformer_forward.1} parent=0 // pred_fallthru
    _
  // Predicated region
  $region26: #{win_encoder_transformer_forward.1} parent=0 // pred_check
    _
  $region27: #{win_encoder_transformer_forward.1} parent=0 // pred_check_branch
    %2737 = sbr.rel (0) target = $region29
  $region28: #{win_encoder_transformer_forward.1} parent=0 // pred_region
    _
  $region29: #{win_encoder_transformer_forward.1} parent=0 // pred_fallthru
    _

</llo_original>
